<compile_context>
chip_gen: v6e
topology: v6e:2x2x1
jax: 0.10.0
libtpu: 0.0.40
codegen_flags: <defaults>
</compile_context>

<pallas_src>
import jax
import jax.numpy as jnp
from jax.experimental import pallas as pl
from jax.experimental.pallas import tpu as pltpu

K = 7
PAD = K // 2


def _round_up(x, m):
    return (x + m - 1) // m * m


def spatial_attention_kernel(x_ref, w_ref, b_ref, o_ref, pad_ref):
    # x_ref  : (G, C, H, W)  VMEM input tile (G batch items, NCHW)
    # w_ref  : (2*K*K,)      SMEM flattened conv weight (c-major, ky, kx)
    # b_ref  : (1,)          SMEM conv bias
    # o_ref  : (Ho, Wp)      VMEM lane-dense packed output slab
    # pad_ref: (2, Hp, Wp)   VMEM zero-padded, lane-packed [max, avg] maps
    G, C, H, W = x_ref.shape
    Ho, Wp = o_ref.shape
    _, Hp, _ = pad_ref.shape
    S = W + 2 * PAD

    # Static safety checks for the roll-as-zero-padding trick.
    assert G * S <= Wp, (G, S, Wp)
    assert Ho + K - 1 <= Hp, (Ho, Hp)

    # Re-zero the packed scratch every step (a handful of full-width vst).
    # Required: (a) the inter-segment / border lanes+rows must be zero, and
    # (b) each TensorCore owns a private scratch when the grid is core-split,
    # so a program_id==0 guard would not be enough.
    # NOTE: lanes outside [g*S+PAD, g*S+PAD+W) and rows outside [PAD, PAD+H)
    # must NEVER be written -- the zero padding of the conv depends on it.
    pad_ref[...] = jnp.zeros_like(pad_ref)

    # Channel reduction, one item per lane segment.
    inv_c = 1.0 / C
    for g in range(G):
        x = x_ref[g].astype(jnp.float32)          # (C, H, W)
        mx = jnp.max(x, axis=0)                   # (H, W) channel max
        av = jnp.sum(x, axis=0) * inv_c           # (H, W) channel mean
        off = g * S + PAD                         # static lane offset
        pad_ref[0, pl.ds(PAD, H), pl.ds(off, W)] = mx
        pad_ref[1, pl.ds(PAD, H), pl.ds(off, W)] = av

    # 7x7 "same" conv (2 in-channels -> 1 out-channel) over the packed slab,
    # on the VPU/XLU.  Four partial accumulators break the serial add chain.
    accs = [jnp.zeros((Ho, Wp), jnp.float32) for _ in range(4)]
    for c in range(2):
        for dy in range(K):
            # One full-width row-band load per (c, dy): 14 loads total.
            band = pad_ref[c, pl.ds(dy, Ho), :]   # (Ho, Wp)
            a = c * 2 + (dy & 1)
            for dx in range(K):
                wt = w_ref[c * K * K + dy * K + dx]   # SMEM read at use site
                if dx == PAD:
                    tap = band
                else:
                    # tap[:, l] == padded[:, l + dx - PAD]; for valid lanes the
                    # source stays inside the segment's zero-flanked window.
                    tap = pltpu.roll(band, shift=(PAD - dx) % Wp, axis=1)
                accs[a] = accs[a] + wt * tap

    acc = (accs[0] + accs[1]) + (accs[2] + accs[3]) + b_ref[0]
    o_ref[...] = jax.nn.sigmoid(acc).astype(o_ref.dtype)


def spatial_attention(x, weight, bias):
    """x: (B, C, H, W); weight: (1, 2, K, K); bias: (1,). Returns (B, 1, H, W)."""
    B, C, H, W = x.shape
    S = W + 2 * PAD
    if S <= 128:
        Wp = 128
        G = max(1, min(128 // S, B))     # items packed per 128-lane slab
    else:
        Wp = _round_up(S, 128)
        G = 1
    assert G * S <= Wp and S <= Wp, (G, S, Wp)

    Ho = _round_up(H, 8)                 # sublane-rounded output rows
    Hp = _round_up(Ho + 2 * PAD, 8)      # padded scratch rows (>= Ho + K - 1)

    n_groups = -(-B // G)                # ceil(B / G)
    B_pad = n_groups * G
    if B_pad != B:                       # pad batch with junk items (discarded)
        x = jnp.pad(x, ((0, B_pad - B), (0, 0), (0, 0), (0, 0)))

    w_flat = weight.reshape(-1).astype(jnp.float32)   # (2*K*K,)
    b = bias.astype(jnp.float32)                      # (1,)

    out_wide = pl.pallas_call(
        spatial_attention_kernel,
        out_shape=jax.ShapeDtypeStruct((n_groups, Ho, Wp), x.dtype),
        grid_spec=pltpu.PrefetchScalarGridSpec(
            num_scalar_prefetch=0,
            grid=(n_groups,),
            in_specs=[
                pl.BlockSpec((G, C, H, W), lambda g: (g, 0, 0, 0)),
                pl.BlockSpec(memory_space=pltpu.MemorySpace.SMEM),
                pl.BlockSpec(memory_space=pltpu.MemorySpace.SMEM),
            ],
            out_specs=pl.BlockSpec((None, Ho, Wp), lambda g: (g, 0, 0)),
            scratch_shapes=[
                pltpu.VMEM((2, Hp, Wp), jnp.float32),
            ],
        ),
        compiler_params=pltpu.CompilerParams(
            dimension_semantics=("parallel",),
            vmem_limit_bytes=32 * 1024 * 1024,
        ),
    )(x, w_flat, b)

    # Unpack: (n_groups, Ho, Wp) -> (B, 1, H, W).  Cheap XLA layout plumbing.
    out = out_wide[:, :H, : G * S]                   # (n_groups, H, G*S)
    out = out.reshape(n_groups, H, G, S)             # split lane segments
    out = jnp.transpose(out, (0, 2, 1, 3))           # (n_groups, G, H, S)
    out = out.reshape(B_pad, H, S)[:B, :, PAD:PAD + W]
    return out.reshape(B, 1, H, W)


def spatial_attention_ref(x, weight, bias):
    mx = jnp.max(x, axis=1, keepdims=True)
    av = jnp.mean(x, axis=1, keepdims=True)
    cat = jnp.concatenate([mx, av], axis=1)
    out = jax.lax.conv_general_dilated(
        cat, weight, window_strides=(1, 1),
        padding=[(PAD, PAD), (PAD, PAD)],
        dimension_numbers=("NCHW", "OIHW", "NCHW"),
    )
    return jax.nn.sigmoid(out + bias[None, :, None, None])


if __name__ == "__main__":
    B, C, H, W = 2, 4, 16, 16
    key = jax.random.PRNGKey(0)
    kx, kw, kb = jax.random.split(key, 3)

    x = jax.random.normal(kx, (B, C, H, W), jnp.float32)

    # Deterministic PyTorch-style conv init: U(-1/sqrt(fan_in), 1/sqrt(fan_in))
    fan_in = 2 * K * K
    bound = 1.0 / (fan_in ** 0.5)
    weight = jax.random.uniform(kw, (1, 2, K, K), jnp.float32, -bound, bound)
    bias = jax.random.uniform(kb, (1,), jnp.float32, -bound, bound)

    out = jax.block_until_ready(spatial_attention(x, weight, bias))

    ref = spatial_attention_ref(x, weight, bias)
    assert out.shape == (B, 1, H, W), out.shape
    assert jnp.allclose(out, ref, atol=1e-5, rtol=1e-5), float(
        jnp.max(jnp.abs(out - ref))
    )
    print("KERNEL_OK")
</pallas_src>

<mosaic_0001>
module attributes {stable_mosaic.version = 11 : i64} {
  func.func @spatial_attention_kernel(%arg0: i32, %arg1: memref<2x4x16x16xf32, #tpu.memory_space<vmem>>, %arg2: memref<98xf32, #tpu.memory_space<smem>>, %arg3: memref<1xf32, #tpu.memory_space<smem>>, %arg4: memref<1x16x128xf32, #tpu.memory_space<vmem>>, %arg5: memref<2x24x128xf32, #tpu.memory_space<vmem>>) attributes {dimension_semantics = [#tpu.dimension_semantics<parallel>], iteration_bounds = array<i64: 1>, scalar_prefetch = 0 : i64, scratch_operands = 1 : i64, tpu.core_type = #tpu.core_type<tc>, window_params = [{transform_indices = @transform_0, window_bounds = array<i64: 2, 4, 16, 16>}, {transform_indices = @transform_1, window_bounds = array<i64: 98>}, {transform_indices = @transform_2, window_bounds = array<i64: 1>}, {transform_indices = @transform_3, window_bounds = array<i64: 1, 16, 128>}]} {
    %cst = arith.constant 0.000000e+00 : f32
    %0 = vector.broadcast %cst : f32 to vector<2x24x128xf32>
    %c0 = arith.constant 0 : index
    %c0_0 = arith.constant 0 : index
    %c0_1 = arith.constant 0 : index
    %1 = vector.load %arg5[%c0, %c0_0, %c0_1] : memref<2x24x128xf32, #tpu.memory_space<vmem>>, vector<2x24x128xf32>
    tpu.vector_store %arg5[%c0, %c0_0, %c0_1], %0 {strides = array<i32>} : memref<2x24x128xf32, #tpu.memory_space<vmem>>, vector<2x24x128xf32>,
    %c0_2 = arith.constant 0 : index
    %c0_3 = arith.constant 0 : index
    %c0_4 = arith.constant 0 : index
    %c0_5 = arith.constant 0 : index
    %2 = vector.load %arg1[%c0_2, %c0_3, %c0_4, %c0_5] : memref<2x4x16x16xf32, #tpu.memory_space<vmem>>, vector<1x4x16x16xf32>
    %3 = vector.shape_cast %2 : vector<1x4x16x16xf32> to vector<4x16x16xf32>
    %cst_6 = arith.constant dense<0xFF800000> : vector<16x16xf32>
    %4 = vector.multi_reduction <maximumf>, %3, %cst_6 [0] : vector<4x16x16xf32> to vector<16x16xf32>
    %cst_7 = arith.constant dense<0.000000e+00> : vector<16x16xf32>
    %5 = vector.multi_reduction <add>, %3, %cst_7 [0] : vector<4x16x16xf32> to vector<16x16xf32>
    %cst_8 = arith.constant 2.500000e-01 : f32
    %6 = vector.broadcast %cst_8 : f32 to vector<16x16xf32>
    %7 = arith.mulf %5, %6 : vector<16x16xf32>
    %c0_9 = arith.constant 0 : index
    %c3 = arith.constant 3 : index
    %c3_10 = arith.constant 3 : index
    %8 = vector.load %arg5[%c0_9, %c3, %c3_10] : memref<2x24x128xf32, #tpu.memory_space<vmem>>, vector<1x16x16xf32>
    %9 = vector.shape_cast %8 : vector<1x16x16xf32> to vector<16x16xf32>
    %10 = vector.shape_cast %4 : vector<16x16xf32> to vector<1x16x16xf32>
    tpu.vector_store %arg5[%c0_9, %c3, %c3_10], %10 {strides = array<i32>} : memref<2x24x128xf32, #tpu.memory_space<vmem>>, vector<1x16x16xf32>,
    %c1 = arith.constant 1 : index
    %c3_11 = arith.constant 3 : index
    %c3_12 = arith.constant 3 : index
    %11 = vector.load %arg5[%c1, %c3_11, %c3_12] : memref<2x24x128xf32, #tpu.memory_space<vmem>>, vector<1x16x16xf32>
    %12 = vector.shape_cast %11 : vector<1x16x16xf32> to vector<16x16xf32>
    %13 = vector.shape_cast %7 : vector<16x16xf32> to vector<1x16x16xf32>
    tpu.vector_store %arg5[%c1, %c3_11, %c3_12], %13 {strides = array<i32>} : memref<2x24x128xf32, #tpu.memory_space<vmem>>, vector<1x16x16xf32>,
    %c1_13 = arith.constant 1 : index
    %c0_14 = arith.constant 0 : index
    %c0_15 = arith.constant 0 : index
    %c0_16 = arith.constant 0 : index
    %14 = vector.load %arg1[%c1_13, %c0_14, %c0_15, %c0_16] : memref<2x4x16x16xf32, #tpu.memory_space<vmem>>, vector<1x4x16x16xf32>
    %15 = vector.shape_cast %14 : vector<1x4x16x16xf32> to vector<4x16x16xf32>
    %cst_17 = arith.constant dense<0xFF800000> : vector<16x16xf32>
    %16 = vector.multi_reduction <maximumf>, %15, %cst_17 [0] : vector<4x16x16xf32> to vector<16x16xf32>
    %cst_18 = arith.constant dense<0.000000e+00> : vector<16x16xf32>
    %17 = vector.multi_reduction <add>, %15, %cst_18 [0] : vector<4x16x16xf32> to vector<16x16xf32>
    %cst_19 = arith.constant 2.500000e-01 : f32
    %18 = vector.broadcast %cst_19 : f32 to vector<16x16xf32>
    %19 = arith.mulf %17, %18 : vector<16x16xf32>
    %c0_20 = arith.constant 0 : index
    %c3_21 = arith.constant 3 : index
    %c25 = arith.constant 25 : index
    %20 = vector.load %arg5[%c0_20, %c3_21, %c25] : memref<2x24x128xf32, #tpu.memory_space<vmem>>, vector<1x16x16xf32>
    %21 = vector.shape_cast %20 : vector<1x16x16xf32> to vector<16x16xf32>
    %22 = vector.shape_cast %16 : vector<16x16xf32> to vector<1x16x16xf32>
    tpu.vector_store %arg5[%c0_20, %c3_21, %c25], %22 {strides = array<i32>} : memref<2x24x128xf32, #tpu.memory_space<vmem>>, vector<1x16x16xf32>,
    %c1_22 = arith.constant 1 : index
    %c3_23 = arith.constant 3 : index
    %c25_24 = arith.constant 25 : index
    %23 = vector.load %arg5[%c1_22, %c3_23, %c25_24] : memref<2x24x128xf32, #tpu.memory_space<vmem>>, vector<1x16x16xf32>
    %24 = vector.shape_cast %23 : vector<1x16x16xf32> to vector<16x16xf32>
    %25 = vector.shape_cast %19 : vector<16x16xf32> to vector<1x16x16xf32>
    tpu.vector_store %arg5[%c1_22, %c3_23, %c25_24], %25 {strides = array<i32>} : memref<2x24x128xf32, #tpu.memory_space<vmem>>, vector<1x16x16xf32>,
    %cst_25 = arith.constant 0.000000e+00 : f32
    %26 = vector.broadcast %cst_25 : f32 to vector<16x128xf32>
    %cst_26 = arith.constant 0.000000e+00 : f32
    %27 = vector.broadcast %cst_26 : f32 to vector<16x128xf32>
    %cst_27 = arith.constant 0.000000e+00 : f32
    %28 = vector.broadcast %cst_27 : f32 to vector<16x128xf32>
    %cst_28 = arith.constant 0.000000e+00 : f32
    %29 = vector.broadcast %cst_28 : f32 to vector<16x128xf32>
    %c0_29 = arith.constant 0 : index
    %c0_30 = arith.constant 0 : index
    %c0_31 = arith.constant 0 : index
    %30 = vector.load %arg5[%c0_29, %c0_30, %c0_31] : memref<2x24x128xf32, #tpu.memory_space<vmem>>, vector<1x16x128xf32>
    %31 = vector.shape_cast %30 : vector<1x16x128xf32> to vector<16x128xf32>
    %c0_32 = arith.constant 0 : index
    %32 = memref.load %arg2[%c0_32] : memref<98xf32, #tpu.memory_space<smem>>
    %c3_i32 = arith.constant 3 : i32
    %33 = tpu.dynamic_rotate %31 by %c3_i32 dim 1 : vector<16x128xf32>, i32 -> vector<16x128xf32>
    %34 = vector.broadcast %32 : f32 to vector<16x128xf32>
    %35 = arith.mulf %34, %33 : vector<16x128xf32>
    %36 = arith.addf %26, %35 : vector<16x128xf32>
    %c1_33 = arith.constant 1 : index
    %37 = memref.load %arg2[%c1_33] : memref<98xf32, #tpu.memory_space<smem>>
    %c2_i32 = arith.constant 2 : i32
    %38 = tpu.dynamic_rotate %31 by %c2_i32 dim 1 : vector<16x128xf32>, i32 -> vector<16x128xf32>
    %39 = vector.broadcast %37 : f32 to vector<16x128xf32>
    %40 = arith.mulf %39, %38 : vector<16x128xf32>
    %41 = arith.addf %36, %40 : vector<16x128xf32>
    %c2 = arith.constant 2 : index
    %42 = memref.load %arg2[%c2] : memref<98xf32, #tpu.memory_space<smem>>
    %c1_i32 = arith.constant 1 : i32
    %43 = tpu.dynamic_rotate %31 by %c1_i32 dim 1 : vector<16x128xf32>, i32 -> vector<16x128xf32>
    %44 = vector.broadcast %42 : f32 to vector<16x128xf32>
    %45 = arith.mulf %44, %43 : vector<16x128xf32>
    %46 = arith.addf %41, %45 : vector<16x128xf32>
    %c3_34 = arith.constant 3 : index
    %47 = memref.load %arg2[%c3_34] : memref<98xf32, #tpu.memory_space<smem>>
    %48 = vector.broadcast %47 : f32 to vector<16x128xf32>
    %49 = arith.mulf %48, %31 : vector<16x128xf32>
    %50 = arith.addf %46, %49 : vector<16x128xf32>
    %c4 = arith.constant 4 : index
    %51 = memref.load %arg2[%c4] : memref<98xf32, #tpu.memory_space<smem>>
    %c127_i32 = arith.constant 127 : i32
    %52 = tpu.dynamic_rotate %31 by %c127_i32 dim 1 : vector<16x128xf32>, i32 -> vector<16x128xf32>
    %53 = vector.broadcast %51 : f32 to vector<16x128xf32>
    %54 = arith.mulf %53, %52 : vector<16x128xf32>
    %55 = arith.addf %50, %54 : vector<16x128xf32>
    %c5 = arith.constant 5 : index
    %56 = memref.load %arg2[%c5] : memref<98xf32, #tpu.memory_space<smem>>
    %c126_i32 = arith.constant 126 : i32
    %57 = tpu.dynamic_rotate %31 by %c126_i32 dim 1 : vector<16x128xf32>, i32 -> vector<16x128xf32>
    %58 = vector.broadcast %56 : f32 to vector<16x128xf32>
    %59 = arith.mulf %58, %57 : vector<16x128xf32>
    %60 = arith.addf %55, %59 : vector<16x128xf32>
    %c6 = arith.constant 6 : index
    %61 = memref.load %arg2[%c6] : memref<98xf32, #tpu.memory_space<smem>>
    %c125_i32 = arith.constant 125 : i32
    %62 = tpu.dynamic_rotate %31 by %c125_i32 dim 1 : vector<16x128xf32>, i32 -> vector<16x128xf32>
    %63 = vector.broadcast %61 : f32 to vector<16x128xf32>
    %64 = arith.mulf %63, %62 : vector<16x128xf32>
    %65 = arith.addf %60, %64 : vector<16x128xf32>
    %c0_35 = arith.constant 0 : index
    %c1_36 = arith.constant 1 : index
    %c0_37 = arith.constant 0 : index
    %66 = vector.load %arg5[%c0_35, %c1_36, %c0_37] : memref<2x24x128xf32, #tpu.memory_space<vmem>>, vector<1x16x128xf32>
    %67 = vector.shape_cast %66 : vector<1x16x128xf32> to vector<16x128xf32>
    %c7 = arith.constant 7 : index
    %68 = memref.load %arg2[%c7] : memref<98xf32, #tpu.memory_space<smem>>
    %c3_i32_38 = arith.constant 3 : i32
    %69 = tpu.dynamic_rotate %67 by %c3_i32_38 dim 1 : vector<16x128xf32>, i32 -> vector<16x128xf32>
    %70 = vector.broadcast %68 : f32 to vector<16x128xf32>
    %71 = arith.mulf %70, %69 : vector<16x128xf32>
    %72 = arith.addf %27, %71 : vector<16x128xf32>
    %c8 = arith.constant 8 : index
    %73 = memref.load %arg2[%c8] : memref<98xf32, #tpu.memory_space<smem>>
    %c2_i32_39 = arith.constant 2 : i32
    %74 = tpu.dynamic_rotate %67 by %c2_i32_39 dim 1 : vector<16x128xf32>, i32 -> vector<16x128xf32>
    %75 = vector.broadcast %73 : f32 to vector<16x128xf32>
    %76 = arith.mulf %75, %74 : vector<16x128xf32>
    %77 = arith.addf %72, %76 : vector<16x128xf32>
    %c9 = arith.constant 9 : index
    %78 = memref.load %arg2[%c9] : memref<98xf32, #tpu.memory_space<smem>>
    %c1_i32_40 = arith.constant 1 : i32
    %79 = tpu.dynamic_rotate %67 by %c1_i32_40 dim 1 : vector<16x128xf32>, i32 -> vector<16x128xf32>
    %80 = vector.broadcast %78 : f32 to vector<16x128xf32>
    %81 = arith.mulf %80, %79 : vector<16x128xf32>
    %82 = arith.addf %77, %81 : vector<16x128xf32>
    %c10 = arith.constant 10 : index
    %83 = memref.load %arg2[%c10] : memref<98xf32, #tpu.memory_space<smem>>
    %84 = vector.broadcast %83 : f32 to vector<16x128xf32>
    %85 = arith.mulf %84, %67 : vector<16x128xf32>
    %86 = arith.addf %82, %85 : vector<16x128xf32>
    %c11 = arith.constant 11 : index
    %87 = memref.load %arg2[%c11] : memref<98xf32, #tpu.memory_space<smem>>
    %c127_i32_41 = arith.constant 127 : i32
    %88 = tpu.dynamic_rotate %67 by %c127_i32_41 dim 1 : vector<16x128xf32>, i32 -> vector<16x128xf32>
    %89 = vector.broadcast %87 : f32 to vector<16x128xf32>
    %90 = arith.mulf %89, %88 : vector<16x128xf32>
    %91 = arith.addf %86, %90 : vector<16x128xf32>
    %c12 = arith.constant 12 : index
    %92 = memref.load %arg2[%c12] : memref<98xf32, #tpu.memory_space<smem>>
    %c126_i32_42 = arith.constant 126 : i32
    %93 = tpu.dynamic_rotate %67 by %c126_i32_42 dim 1 : vector<16x128xf32>, i32 -> vector<16x128xf32>
    %94 = vector.broadcast %92 : f32 to vector<16x128xf32>
    %95 = arith.mulf %94, %93 : vector<16x128xf32>
    %96 = arith.addf %91, %95 : vector<16x128xf32>
    %c13 = arith.constant 13 : index
    %97 = memref.load %arg2[%c13] : memref<98xf32, #tpu.memory_space<smem>>
    %c125_i32_43 = arith.constant 125 : i32
    %98 = tpu.dynamic_rotate %67 by %c125_i32_43 dim 1 : vector<16x128xf32>, i32 -> vector<16x128xf32>
    %99 = vector.broadcast %97 : f32 to vector<16x128xf32>
    %100 = arith.mulf %99, %98 : vector<16x128xf32>
    %101 = arith.addf %96, %100 : vector<16x128xf32>
    %c0_44 = arith.constant 0 : index
    %c2_45 = arith.constant 2 : index
    %c0_46 = arith.constant 0 : index
    %102 = vector.load %arg5[%c0_44, %c2_45, %c0_46] : memref<2x24x128xf32, #tpu.memory_space<vmem>>, vector<1x16x128xf32>
    %103 = vector.shape_cast %102 : vector<1x16x128xf32> to vector<16x128xf32>
    %c14 = arith.constant 14 : index
    %104 = memref.load %arg2[%c14] : memref<98xf32, #tpu.memory_space<smem>>
    %c3_i32_47 = arith.constant 3 : i32
    %105 = tpu.dynamic_rotate %103 by %c3_i32_47 dim 1 : vector<16x128xf32>, i32 -> vector<16x128xf32>
    %106 = vector.broadcast %104 : f32 to vector<16x128xf32>
    %107 = arith.mulf %106, %105 : vector<16x128xf32>
    %108 = arith.addf %65, %107 : vector<16x128xf32>
    %c15 = arith.constant 15 : index
    %109 = memref.load %arg2[%c15] : memref<98xf32, #tpu.memory_space<smem>>
    %c2_i32_48 = arith.constant 2 : i32
    %110 = tpu.dynamic_rotate %103 by %c2_i32_48 dim 1 : vector<16x128xf32>, i32 -> vector<16x128xf32>
    %111 = vector.broadcast %109 : f32 to vector<16x128xf32>
    %112 = arith.mulf %111, %110 : vector<16x128xf32>
    %113 = arith.addf %108, %112 : vector<16x128xf32>
    %c16 = arith.constant 16 : index
    %114 = memref.load %arg2[%c16] : memref<98xf32, #tpu.memory_space<smem>>
    %c1_i32_49 = arith.constant 1 : i32
    %115 = tpu.dynamic_rotate %103 by %c1_i32_49 dim 1 : vector<16x128xf32>, i32 -> vector<16x128xf32>
    %116 = vector.broadcast %114 : f32 to vector<16x128xf32>
    %117 = arith.mulf %116, %115 : vector<16x128xf32>
    %118 = arith.addf %113, %117 : vector<16x128xf32>
    %c17 = arith.constant 17 : index
    %119 = memref.load %arg2[%c17] : memref<98xf32, #tpu.memory_space<smem>>
    %120 = vector.broadcast %119 : f32 to vector<16x128xf32>
    %121 = arith.mulf %120, %103 : vector<16x128xf32>
    %122 = arith.addf %118, %121 : vector<16x128xf32>
    %c18 = arith.constant 18 : index
    %123 = memref.load %arg2[%c18] : memref<98xf32, #tpu.memory_space<smem>>
    %c127_i32_50 = arith.constant 127 : i32
    %124 = tpu.dynamic_rotate %103 by %c127_i32_50 dim 1 : vector<16x128xf32>, i32 -> vector<16x128xf32>
    %125 = vector.broadcast %123 : f32 to vector<16x128xf32>
    %126 = arith.mulf %125, %124 : vector<16x128xf32>
    %127 = arith.addf %122, %126 : vector<16x128xf32>
    %c19 = arith.constant 19 : index
    %128 = memref.load %arg2[%c19] : memref<98xf32, #tpu.memory_space<smem>>
    %c126_i32_51 = arith.constant 126 : i32
    %129 = tpu.dynamic_rotate %103 by %c126_i32_51 dim 1 : vector<16x128xf32>, i32 -> vector<16x128xf32>
    %130 = vector.broadcast %128 : f32 to vector<16x128xf32>
    %131 = arith.mulf %130, %129 : vector<16x128xf32>
    %132 = arith.addf %127, %131 : vector<16x128xf32>
    %c20 = arith.constant 20 : index
    %133 = memref.load %arg2[%c20] : memref<98xf32, #tpu.memory_space<smem>>
    %c125_i32_52 = arith.constant 125 : i32
    %134 = tpu.dynamic_rotate %103 by %c125_i32_52 dim 1 : vector<16x128xf32>, i32 -> vector<16x128xf32>
    %135 = vector.broadcast %133 : f32 to vector<16x128xf32>
    %136 = arith.mulf %135, %134 : vector<16x128xf32>
    %137 = arith.addf %132, %136 : vector<16x128xf32>
    %c0_53 = arith.constant 0 : index
    %c3_54 = arith.constant 3 : index
    %c0_55 = arith.constant 0 : index
    %138 = vector.load %arg5[%c0_53, %c3_54, %c0_55] : memref<2x24x128xf32, #tpu.memory_space<vmem>>, vector<1x16x128xf32>
    %139 = vector.shape_cast %138 : vector<1x16x128xf32> to vector<16x128xf32>
    %c21 = arith.constant 21 : index
    %140 = memref.load %arg2[%c21] : memref<98xf32, #tpu.memory_space<smem>>
    %c3_i32_56 = arith.constant 3 : i32
    %141 = tpu.dynamic_rotate %139 by %c3_i32_56 dim 1 : vector<16x128xf32>, i32 -> vector<16x128xf32>
    %142 = vector.broadcast %140 : f32 to vector<16x128xf32>
    %143 = arith.mulf %142, %141 : vector<16x128xf32>
    %144 = arith.addf %101, %143 : vector<16x128xf32>
    %c22 = arith.constant 22 : index
    %145 = memref.load %arg2[%c22] : memref<98xf32, #tpu.memory_space<smem>>
    %c2_i32_57 = arith.constant 2 : i32
    %146 = tpu.dynamic_rotate %139 by %c2_i32_57 dim 1 : vector<16x128xf32>, i32 -> vector<16x128xf32>
    %147 = vector.broadcast %145 : f32 to vector<16x128xf32>
    %148 = arith.mulf %147, %146 : vector<16x128xf32>
    %149 = arith.addf %144, %148 : vector<16x128xf32>
    %c23 = arith.constant 23 : index
    %150 = memref.load %arg2[%c23] : memref<98xf32, #tpu.memory_space<smem>>
    %c1_i32_58 = arith.constant 1 : i32
    %151 = tpu.dynamic_rotate %139 by %c1_i32_58 dim 1 : vector<16x128xf32>, i32 -> vector<16x128xf32>
    %152 = vector.broadcast %150 : f32 to vector<16x128xf32>
    %153 = arith.mulf %152, %151 : vector<16x128xf32>
    %154 = arith.addf %149, %153 : vector<16x128xf32>
    %c24 = arith.constant 24 : index
    %155 = memref.load %arg2[%c24] : memref<98xf32, #tpu.memory_space<smem>>
    %156 = vector.broadcast %155 : f32 to vector<16x128xf32>
    %157 = arith.mulf %156, %139 : vector<16x128xf32>
    %158 = arith.addf %154, %157 : vector<16x128xf32>
    %c25_59 = arith.constant 25 : index
    %159 = memref.load %arg2[%c25_59] : memref<98xf32, #tpu.memory_space<smem>>
    %c127_i32_60 = arith.constant 127 : i32
    %160 = tpu.dynamic_rotate %139 by %c127_i32_60 dim 1 : vector<16x128xf32>, i32 -> vector<16x128xf32>
    %161 = vector.broadcast %159 : f32 to vector<16x128xf32>
    %162 = arith.mulf %161, %160 : vector<16x128xf32>
    %163 = arith.addf %158, %162 : vector<16x128xf32>
    %c26 = arith.constant 26 : index
    %164 = memref.load %arg2[%c26] : memref<98xf32, #tpu.memory_space<smem>>
    %c126_i32_61 = arith.constant 126 : i32
    %165 = tpu.dynamic_rotate %139 by %c126_i32_61 dim 1 : vector<16x128xf32>, i32 -> vector<16x128xf32>
    %166 = vector.broadcast %164 : f32 to vector<16x128xf32>
    %167 = arith.mulf %166, %165 : vector<16x128xf32>
    %168 = arith.addf %163, %167 : vector<16x128xf32>
    %c27 = arith.constant 27 : index
    %169 = memref.load %arg2[%c27] : memref<98xf32, #tpu.memory_space<smem>>
    %c125_i32_62 = arith.constant 125 : i32
    %170 = tpu.dynamic_rotate %139 by %c125_i32_62 dim 1 : vector<16x128xf32>, i32 -> vector<16x128xf32>
    %171 = vector.broadcast %169 : f32 to vector<16x128xf32>
    %172 = arith.mulf %171, %170 : vector<16x128xf32>
    %173 = arith.addf %168, %172 : vector<16x128xf32>
    %c0_63 = arith.constant 0 : index
    %c4_64 = arith.constant 4 : index
    %c0_65 = arith.constant 0 : index
    %174 = vector.load %arg5[%c0_63, %c4_64, %c0_65] : memref<2x24x128xf32, #tpu.memory_space<vmem>>, vector<1x16x128xf32>
    %175 = vector.shape_cast %174 : vector<1x16x128xf32> to vector<16x128xf32>
    %c28 = arith.constant 28 : index
    %176 = memref.load %arg2[%c28] : memref<98xf32, #tpu.memory_space<smem>>
    %c3_i32_66 = arith.constant 3 : i32
    %177 = tpu.dynamic_rotate %175 by %c3_i32_66 dim 1 : vector<16x128xf32>, i32 -> vector<16x128xf32>
    %178 = vector.broadcast %176 : f32 to vector<16x128xf32>
    %179 = arith.mulf %178, %177 : vector<16x128xf32>
    %180 = arith.addf %137, %179 : vector<16x128xf32>
    %c29 = arith.constant 29 : index
    %181 = memref.load %arg2[%c29] : memref<98xf32, #tpu.memory_space<smem>>
    %c2_i32_67 = arith.constant 2 : i32
    %182 = tpu.dynamic_rotate %175 by %c2_i32_67 dim 1 : vector<16x128xf32>, i32 -> vector<16x128xf32>
    %183 = vector.broadcast %181 : f32 to vector<16x128xf32>
    %184 = arith.mulf %183, %182 : vector<16x128xf32>
    %185 = arith.addf %180, %184 : vector<16x128xf32>
    %c30 = arith.constant 30 : index
    %186 = memref.load %arg2[%c30] : memref<98xf32, #tpu.memory_space<smem>>
    %c1_i32_68 = arith.constant 1 : i32
    %187 = tpu.dynamic_rotate %175 by %c1_i32_68 dim 1 : vector<16x128xf32>, i32 -> vector<16x128xf32>
    %188 = vector.broadcast %186 : f32 to vector<16x128xf32>
    %189 = arith.mulf %188, %187 : vector<16x128xf32>
    %190 = arith.addf %185, %189 : vector<16x128xf32>
    %c31 = arith.constant 31 : index
    %191 = memref.load %arg2[%c31] : memref<98xf32, #tpu.memory_space<smem>>
    %192 = vector.broadcast %191 : f32 to vector<16x128xf32>
    %193 = arith.mulf %192, %175 : vector<16x128xf32>
    %194 = arith.addf %190, %193 : vector<16x128xf32>
    %c32 = arith.constant 32 : index
    %195 = memref.load %arg2[%c32] : memref<98xf32, #tpu.memory_space<smem>>
    %c127_i32_69 = arith.constant 127 : i32
    %196 = tpu.dynamic_rotate %175 by %c127_i32_69 dim 1 : vector<16x128xf32>, i32 -> vector<16x128xf32>
    %197 = vector.broadcast %195 : f32 to vector<16x128xf32>
    %198 = arith.mulf %197, %196 : vector<16x128xf32>
    %199 = arith.addf %194, %198 : vector<16x128xf32>
    %c33 = arith.constant 33 : index
    %200 = memref.load %arg2[%c33] : memref<98xf32, #tpu.memory_space<smem>>
    %c126_i32_70 = arith.constant 126 : i32
    %201 = tpu.dynamic_rotate %175 by %c126_i32_70 dim 1 : vector<16x128xf32>, i32 -> vector<16x128xf32>
    %202 = vector.broadcast %200 : f32 to vector<16x128xf32>
    %203 = arith.mulf %202, %201 : vector<16x128xf32>
    %204 = arith.addf %199, %203 : vector<16x128xf32>
    %c34 = arith.constant 34 : index
    %205 = memref.load %arg2[%c34] : memref<98xf32, #tpu.memory_space<smem>>
    %c125_i32_71 = arith.constant 125 : i32
    %206 = tpu.dynamic_rotate %175 by %c125_i32_71 dim 1 : vector<16x128xf32>, i32 -> vector<16x128xf32>
    %207 = vector.broadcast %205 : f32 to vector<16x128xf32>
    %208 = arith.mulf %207, %206 : vector<16x128xf32>
    %209 = arith.addf %204, %208 : vector<16x128xf32>
    %c0_72 = arith.constant 0 : index
    %c5_73 = arith.constant 5 : index
    %c0_74 = arith.constant 0 : index
    %210 = vector.load %arg5[%c0_72, %c5_73, %c0_74] : memref<2x24x128xf32, #tpu.memory_space<vmem>>, vector<1x16x128xf32>
    %211 = vector.shape_cast %210 : vector<1x16x128xf32> to vector<16x128xf32>
    %c35 = arith.constant 35 : index
    %212 = memref.load %arg2[%c35] : memref<98xf32, #tpu.memory_space<smem>>
    %c3_i32_75 = arith.constant 3 : i32
    %213 = tpu.dynamic_rotate %211 by %c3_i32_75 dim 1 : vector<16x128xf32>, i32 -> vector<16x128xf32>
    %214 = vector.broadcast %212 : f32 to vector<16x128xf32>
    %215 = arith.mulf %214, %213 : vector<16x128xf32>
    %216 = arith.addf %173, %215 : vector<16x128xf32>
    %c36 = arith.constant 36 : index
    %217 = memref.load %arg2[%c36] : memref<98xf32, #tpu.memory_space<smem>>
    %c2_i32_76 = arith.constant 2 : i32
    %218 = tpu.dynamic_rotate %211 by %c2_i32_76 dim 1 : vector<16x128xf32>, i32 -> vector<16x128xf32>
    %219 = vector.broadcast %217 : f32 to vector<16x128xf32>
    %220 = arith.mulf %219, %218 : vector<16x128xf32>
    %221 = arith.addf %216, %220 : vector<16x128xf32>
    %c37 = arith.constant 37 : index
    %222 = memref.load %arg2[%c37] : memref<98xf32, #tpu.memory_space<smem>>
    %c1_i32_77 = arith.constant 1 : i32
    %223 = tpu.dynamic_rotate %211 by %c1_i32_77 dim 1 : vector<16x128xf32>, i32 -> vector<16x128xf32>
    %224 = vector.broadcast %222 : f32 to vector<16x128xf32>
    %225 = arith.mulf %224, %223 : vector<16x128xf32>
    %226 = arith.addf %221, %225 : vector<16x128xf32>
    %c38 = arith.constant 38 : index
    %227 = memref.load %arg2[%c38] : memref<98xf32, #tpu.memory_space<smem>>
    %228 = vector.broadcast %227 : f32 to vector<16x128xf32>
    %229 = arith.mulf %228, %211 : vector<16x128xf32>
    %230 = arith.addf %226, %229 : vector<16x128xf32>
    %c39 = arith.constant 39 : index
    %231 = memref.load %arg2[%c39] : memref<98xf32, #tpu.memory_space<smem>>
    %c127_i32_78 = arith.constant 127 : i32
    %232 = tpu.dynamic_rotate %211 by %c127_i32_78 dim 1 : vector<16x128xf32>, i32 -> vector<16x128xf32>
    %233 = vector.broadcast %231 : f32 to vector<16x128xf32>
    %234 = arith.mulf %233, %232 : vector<16x128xf32>
    %235 = arith.addf %230, %234 : vector<16x128xf32>
    %c40 = arith.constant 40 : index
    %236 = memref.load %arg2[%c40] : memref<98xf32, #tpu.memory_space<smem>>
    %c126_i32_79 = arith.constant 126 : i32
    %237 = tpu.dynamic_rotate %211 by %c126_i32_79 dim 1 : vector<16x128xf32>, i32 -> vector<16x128xf32>
    %238 = vector.broadcast %236 : f32 to vector<16x128xf32>
    %239 = arith.mulf %238, %237 : vector<16x128xf32>
    %240 = arith.addf %235, %239 : vector<16x128xf32>
    %c41 = arith.constant 41 : index
    %241 = memref.load %arg2[%c41] : memref<98xf32, #tpu.memory_space<smem>>
    %c125_i32_80 = arith.constant 125 : i32
    %242 = tpu.dynamic_rotate %211 by %c125_i32_80 dim 1 : vector<16x128xf32>, i32 -> vector<16x128xf32>
    %243 = vector.broadcast %241 : f32 to vector<16x128xf32>
    %244 = arith.mulf %243, %242 : vector<16x128xf32>
    %245 = arith.addf %240, %244 : vector<16x128xf32>
    %c0_81 = arith.constant 0 : index
    %c6_82 = arith.constant 6 : index
    %c0_83 = arith.constant 0 : index
    %246 = vector.load %arg5[%c0_81, %c6_82, %c0_83] : memref<2x24x128xf32, #tpu.memory_space<vmem>>, vector<1x16x128xf32>
    %247 = vector.shape_cast %246 : vector<1x16x128xf32> to vector<16x128xf32>
    %c42 = arith.constant 42 : index
    %248 = memref.load %arg2[%c42] : memref<98xf32, #tpu.memory_space<smem>>
    %c3_i32_84 = arith.constant 3 : i32
    %249 = tpu.dynamic_rotate %247 by %c3_i32_84 dim 1 : vector<16x128xf32>, i32 -> vector<16x128xf32>
    %250 = vector.broadcast %248 : f32 to vector<16x128xf32>
    %251 = arith.mulf %250, %249 : vector<16x128xf32>
    %252 = arith.addf %209, %251 : vector<16x128xf32>
    %c43 = arith.constant 43 : index
    %253 = memref.load %arg2[%c43] : memref<98xf32, #tpu.memory_space<smem>>
    %c2_i32_85 = arith.constant 2 : i32
    %254 = tpu.dynamic_rotate %247 by %c2_i32_85 dim 1 : vector<16x128xf32>, i32 -> vector<16x128xf32>
    %255 = vector.broadcast %253 : f32 to vector<16x128xf32>
    %256 = arith.mulf %255, %254 : vector<16x128xf32>
    %257 = arith.addf %252, %256 : vector<16x128xf32>
    %c44 = arith.constant 44 : index
    %258 = memref.load %arg2[%c44] : memref<98xf32, #tpu.memory_space<smem>>
    %c1_i32_86 = arith.constant 1 : i32
    %259 = tpu.dynamic_rotate %247 by %c1_i32_86 dim 1 : vector<16x128xf32>, i32 -> vector<16x128xf32>
    %260 = vector.broadcast %258 : f32 to vector<16x128xf32>
    %261 = arith.mulf %260, %259 : vector<16x128xf32>
    %262 = arith.addf %257, %261 : vector<16x128xf32>
    %c45 = arith.constant 45 : index
    %263 = memref.load %arg2[%c45] : memref<98xf32, #tpu.memory_space<smem>>
    %264 = vector.broadcast %263 : f32 to vector<16x128xf32>
    %265 = arith.mulf %264, %247 : vector<16x128xf32>
    %266 = arith.addf %262, %265 : vector<16x128xf32>
    %c46 = arith.constant 46 : index
    %267 = memref.load %arg2[%c46] : memref<98xf32, #tpu.memory_space<smem>>
    %c127_i32_87 = arith.constant 127 : i32
    %268 = tpu.dynamic_rotate %247 by %c127_i32_87 dim 1 : vector<16x128xf32>, i32 -> vector<16x128xf32>
    %269 = vector.broadcast %267 : f32 to vector<16x128xf32>
    %270 = arith.mulf %269, %268 : vector<16x128xf32>
    %271 = arith.addf %266, %270 : vector<16x128xf32>
    %c47 = arith.constant 47 : index
    %272 = memref.load %arg2[%c47] : memref<98xf32, #tpu.memory_space<smem>>
    %c126_i32_88 = arith.constant 126 : i32
    %273 = tpu.dynamic_rotate %247 by %c126_i32_88 dim 1 : vector<16x128xf32>, i32 -> vector<16x128xf32>
    %274 = vector.broadcast %272 : f32 to vector<16x128xf32>
    %275 = arith.mulf %274, %273 : vector<16x128xf32>
    %276 = arith.addf %271, %275 : vector<16x128xf32>
    %c48 = arith.constant 48 : index
    %277 = memref.load %arg2[%c48] : memref<98xf32, #tpu.memory_space<smem>>
    %c125_i32_89 = arith.constant 125 : i32
    %278 = tpu.dynamic_rotate %247 by %c125_i32_89 dim 1 : vector<16x128xf32>, i32 -> vector<16x128xf32>
    %279 = vector.broadcast %277 : f32 to vector<16x128xf32>
    %280 = arith.mulf %279, %278 : vector<16x128xf32>
    %281 = arith.addf %276, %280 : vector<16x128xf32>
    %c1_90 = arith.constant 1 : index
    %c0_91 = arith.constant 0 : index
    %c0_92 = arith.constant 0 : index
    %282 = vector.load %arg5[%c1_90, %c0_91, %c0_92] : memref<2x24x128xf32, #tpu.memory_space<vmem>>, vector<1x16x128xf32>
    %283 = vector.shape_cast %282 : vector<1x16x128xf32> to vector<16x128xf32>
    %c49 = arith.constant 49 : index
    %284 = memref.load %arg2[%c49] : memref<98xf32, #tpu.memory_space<smem>>
    %c3_i32_93 = arith.constant 3 : i32
    %285 = tpu.dynamic_rotate %283 by %c3_i32_93 dim 1 : vector<16x128xf32>, i32 -> vector<16x128xf32>
    %286 = vector.broadcast %284 : f32 to vector<16x128xf32>
    %287 = arith.mulf %286, %285 : vector<16x128xf32>
    %288 = arith.addf %28, %287 : vector<16x128xf32>
    %c50 = arith.constant 50 : index
    %289 = memref.load %arg2[%c50] : memref<98xf32, #tpu.memory_space<smem>>
    %c2_i32_94 = arith.constant 2 : i32
    %290 = tpu.dynamic_rotate %283 by %c2_i32_94 dim 1 : vector<16x128xf32>, i32 -> vector<16x128xf32>
    %291 = vector.broadcast %289 : f32 to vector<16x128xf32>
    %292 = arith.mulf %291, %290 : vector<16x128xf32>
    %293 = arith.addf %288, %292 : vector<16x128xf32>
    %c51 = arith.constant 51 : index
    %294 = memref.load %arg2[%c51] : memref<98xf32, #tpu.memory_space<smem>>
    %c1_i32_95 = arith.constant 1 : i32
    %295 = tpu.dynamic_rotate %283 by %c1_i32_95 dim 1 : vector<16x128xf32>, i32 -> vector<16x128xf32>
    %296 = vector.broadcast %294 : f32 to vector<16x128xf32>
    %297 = arith.mulf %296, %295 : vector<16x128xf32>
    %298 = arith.addf %293, %297 : vector<16x128xf32>
    %c52 = arith.constant 52 : index
    %299 = memref.load %arg2[%c52] : memref<98xf32, #tpu.memory_space<smem>>
    %300 = vector.broadcast %299 : f32 to vector<16x128xf32>
    %301 = arith.mulf %300, %283 : vector<16x128xf32>
    %302 = arith.addf %298, %301 : vector<16x128xf32>
    %c53 = arith.constant 53 : index
    %303 = memref.load %arg2[%c53] : memref<98xf32, #tpu.memory_space<smem>>
    %c127_i32_96 = arith.constant 127 : i32
    %304 = tpu.dynamic_rotate %283 by %c127_i32_96 dim 1 : vector<16x128xf32>, i32 -> vector<16x128xf32>
    %305 = vector.broadcast %303 : f32 to vector<16x128xf32>
    %306 = arith.mulf %305, %304 : vector<16x128xf32>
    %307 = arith.addf %302, %306 : vector<16x128xf32>
    %c54 = arith.constant 54 : index
    %308 = memref.load %arg2[%c54] : memref<98xf32, #tpu.memory_space<smem>>
    %c126_i32_97 = arith.constant 126 : i32
    %309 = tpu.dynamic_rotate %283 by %c126_i32_97 dim 1 : vector<16x128xf32>, i32 -> vector<16x128xf32>
    %310 = vector.broadcast %308 : f32 to vector<16x128xf32>
    %311 = arith.mulf %310, %309 : vector<16x128xf32>
    %312 = arith.addf %307, %311 : vector<16x128xf32>
    %c55 = arith.constant 55 : index
    %313 = memref.load %arg2[%c55] : memref<98xf32, #tpu.memory_space<smem>>
    %c125_i32_98 = arith.constant 125 : i32
    %314 = tpu.dynamic_rotate %283 by %c125_i32_98 dim 1 : vector<16x128xf32>, i32 -> vector<16x128xf32>
    %315 = vector.broadcast %313 : f32 to vector<16x128xf32>
    %316 = arith.mulf %315, %314 : vector<16x128xf32>
    %317 = arith.addf %312, %316 : vector<16x128xf32>
    %c1_99 = arith.constant 1 : index
    %c1_100 = arith.constant 1 : index
    %c0_101 = arith.constant 0 : index
    %318 = vector.load %arg5[%c1_99, %c1_100, %c0_101] : memref<2x24x128xf32, #tpu.memory_space<vmem>>, vector<1x16x128xf32>
    %319 = vector.shape_cast %318 : vector<1x16x128xf32> to vector<16x128xf32>
    %c56 = arith.constant 56 : index
    %320 = memref.load %arg2[%c56] : memref<98xf32, #tpu.memory_space<smem>>
    %c3_i32_102 = arith.constant 3 : i32
    %321 = tpu.dynamic_rotate %319 by %c3_i32_102 dim 1 : vector<16x128xf32>, i32 -> vector<16x128xf32>
    %322 = vector.broadcast %320 : f32 to vector<16x128xf32>
    %323 = arith.mulf %322, %321 : vector<16x128xf32>
    %324 = arith.addf %29, %323 : vector<16x128xf32>
    %c57 = arith.constant 57 : index
    %325 = memref.load %arg2[%c57] : memref<98xf32, #tpu.memory_space<smem>>
    %c2_i32_103 = arith.constant 2 : i32
    %326 = tpu.dynamic_rotate %319 by %c2_i32_103 dim 1 : vector<16x128xf32>, i32 -> vector<16x128xf32>
    %327 = vector.broadcast %325 : f32 to vector<16x128xf32>
    %328 = arith.mulf %327, %326 : vector<16x128xf32>
    %329 = arith.addf %324, %328 : vector<16x128xf32>
    %c58 = arith.constant 58 : index
    %330 = memref.load %arg2[%c58] : memref<98xf32, #tpu.memory_space<smem>>
    %c1_i32_104 = arith.constant 1 : i32
    %331 = tpu.dynamic_rotate %319 by %c1_i32_104 dim 1 : vector<16x128xf32>, i32 -> vector<16x128xf32>
    %332 = vector.broadcast %330 : f32 to vector<16x128xf32>
    %333 = arith.mulf %332, %331 : vector<16x128xf32>
    %334 = arith.addf %329, %333 : vector<16x128xf32>
    %c59 = arith.constant 59 : index
    %335 = memref.load %arg2[%c59] : memref<98xf32, #tpu.memory_space<smem>>
    %336 = vector.broadcast %335 : f32 to vector<16x128xf32>
    %337 = arith.mulf %336, %319 : vector<16x128xf32>
    %338 = arith.addf %334, %337 : vector<16x128xf32>
    %c60 = arith.constant 60 : index
    %339 = memref.load %arg2[%c60] : memref<98xf32, #tpu.memory_space<smem>>
    %c127_i32_105 = arith.constant 127 : i32
    %340 = tpu.dynamic_rotate %319 by %c127_i32_105 dim 1 : vector<16x128xf32>, i32 -> vector<16x128xf32>
    %341 = vector.broadcast %339 : f32 to vector<16x128xf32>
    %342 = arith.mulf %341, %340 : vector<16x128xf32>
    %343 = arith.addf %338, %342 : vector<16x128xf32>
    %c61 = arith.constant 61 : index
    %344 = memref.load %arg2[%c61] : memref<98xf32, #tpu.memory_space<smem>>
    %c126_i32_106 = arith.constant 126 : i32
    %345 = tpu.dynamic_rotate %319 by %c126_i32_106 dim 1 : vector<16x128xf32>, i32 -> vector<16x128xf32>
    %346 = vector.broadcast %344 : f32 to vector<16x128xf32>
    %347 = arith.mulf %346, %345 : vector<16x128xf32>
    %348 = arith.addf %343, %347 : vector<16x128xf32>
    %c62 = arith.constant 62 : index
    %349 = memref.load %arg2[%c62] : memref<98xf32, #tpu.memory_space<smem>>
    %c125_i32_107 = arith.constant 125 : i32
    %350 = tpu.dynamic_rotate %319 by %c125_i32_107 dim 1 : vector<16x128xf32>, i32 -> vector<16x128xf32>
    %351 = vector.broadcast %349 : f32 to vector<16x128xf32>
    %352 = arith.mulf %351, %350 : vector<16x128xf32>
    %353 = arith.addf %348, %352 : vector<16x128xf32>
    %c1_108 = arith.constant 1 : index
    %c2_109 = arith.constant 2 : index
    %c0_110 = arith.constant 0 : index
    %354 = vector.load %arg5[%c1_108, %c2_109, %c0_110] : memref<2x24x128xf32, #tpu.memory_space<vmem>>, vector<1x16x128xf32>
    %355 = vector.shape_cast %354 : vector<1x16x128xf32> to vector<16x128xf32>
    %c63 = arith.constant 63 : index
    %356 = memref.load %arg2[%c63] : memref<98xf32, #tpu.memory_space<smem>>
    %c3_i32_111 = arith.constant 3 : i32
    %357 = tpu.dynamic_rotate %355 by %c3_i32_111 dim 1 : vector<16x128xf32>, i32 -> vector<16x128xf32>
    %358 = vector.broadcast %356 : f32 to vector<16x128xf32>
    %359 = arith.mulf %358, %357 : vector<16x128xf32>
    %360 = arith.addf %317, %359 : vector<16x128xf32>
    %c64 = arith.constant 64 : index
    %361 = memref.load %arg2[%c64] : memref<98xf32, #tpu.memory_space<smem>>
    %c2_i32_112 = arith.constant 2 : i32
    %362 = tpu.dynamic_rotate %355 by %c2_i32_112 dim 1 : vector<16x128xf32>, i32 -> vector<16x128xf32>
    %363 = vector.broadcast %361 : f32 to vector<16x128xf32>
    %364 = arith.mulf %363, %362 : vector<16x128xf32>
    %365 = arith.addf %360, %364 : vector<16x128xf32>
    %c65 = arith.constant 65 : index
    %366 = memref.load %arg2[%c65] : memref<98xf32, #tpu.memory_space<smem>>
    %c1_i32_113 = arith.constant 1 : i32
    %367 = tpu.dynamic_rotate %355 by %c1_i32_113 dim 1 : vector<16x128xf32>, i32 -> vector<16x128xf32>
    %368 = vector.broadcast %366 : f32 to vector<16x128xf32>
    %369 = arith.mulf %368, %367 : vector<16x128xf32>
    %370 = arith.addf %365, %369 : vector<16x128xf32>
    %c66 = arith.constant 66 : index
    %371 = memref.load %arg2[%c66] : memref<98xf32, #tpu.memory_space<smem>>
    %372 = vector.broadcast %371 : f32 to vector<16x128xf32>
    %373 = arith.mulf %372, %355 : vector<16x128xf32>
    %374 = arith.addf %370, %373 : vector<16x128xf32>
    %c67 = arith.constant 67 : index
    %375 = memref.load %arg2[%c67] : memref<98xf32, #tpu.memory_space<smem>>
    %c127_i32_114 = arith.constant 127 : i32
    %376 = tpu.dynamic_rotate %355 by %c127_i32_114 dim 1 : vector<16x128xf32>, i32 -> vector<16x128xf32>
    %377 = vector.broadcast %375 : f32 to vector<16x128xf32>
    %378 = arith.mulf %377, %376 : vector<16x128xf32>
    %379 = arith.addf %374, %378 : vector<16x128xf32>
    %c68 = arith.constant 68 : index
    %380 = memref.load %arg2[%c68] : memref<98xf32, #tpu.memory_space<smem>>
    %c126_i32_115 = arith.constant 126 : i32
    %381 = tpu.dynamic_rotate %355 by %c126_i32_115 dim 1 : vector<16x128xf32>, i32 -> vector<16x128xf32>
    %382 = vector.broadcast %380 : f32 to vector<16x128xf32>
    %383 = arith.mulf %382, %381 : vector<16x128xf32>
    %384 = arith.addf %379, %383 : vector<16x128xf32>
    %c69 = arith.constant 69 : index
    %385 = memref.load %arg2[%c69] : memref<98xf32, #tpu.memory_space<smem>>
    %c125_i32_116 = arith.constant 125 : i32
    %386 = tpu.dynamic_rotate %355 by %c125_i32_116 dim 1 : vector<16x128xf32>, i32 -> vector<16x128xf32>
    %387 = vector.broadcast %385 : f32 to vector<16x128xf32>
    %388 = arith.mulf %387, %386 : vector<16x128xf32>
    %389 = arith.addf %384, %388 : vector<16x128xf32>
    %c1_117 = arith.constant 1 : index
    %c3_118 = arith.constant 3 : index
    %c0_119 = arith.constant 0 : index
    %390 = vector.load %arg5[%c1_117, %c3_118, %c0_119] : memref<2x24x128xf32, #tpu.memory_space<vmem>>, vector<1x16x128xf32>
    %391 = vector.shape_cast %390 : vector<1x16x128xf32> to vector<16x128xf32>
    %c70 = arith.constant 70 : index
    %392 = memref.load %arg2[%c70] : memref<98xf32, #tpu.memory_space<smem>>
    %c3_i32_120 = arith.constant 3 : i32
    %393 = tpu.dynamic_rotate %391 by %c3_i32_120 dim 1 : vector<16x128xf32>, i32 -> vector<16x128xf32>
    %394 = vector.broadcast %392 : f32 to vector<16x128xf32>
    %395 = arith.mulf %394, %393 : vector<16x128xf32>
    %396 = arith.addf %353, %395 : vector<16x128xf32>
    %c71 = arith.constant 71 : index
    %397 = memref.load %arg2[%c71] : memref<98xf32, #tpu.memory_space<smem>>
    %c2_i32_121 = arith.constant 2 : i32
    %398 = tpu.dynamic_rotate %391 by %c2_i32_121 dim 1 : vector<16x128xf32>, i32 -> vector<16x128xf32>
    %399 = vector.broadcast %397 : f32 to vector<16x128xf32>
    %400 = arith.mulf %399, %398 : vector<16x128xf32>
    %401 = arith.addf %396, %400 : vector<16x128xf32>
    %c72 = arith.constant 72 : index
    %402 = memref.load %arg2[%c72] : memref<98xf32, #tpu.memory_space<smem>>
    %c1_i32_122 = arith.constant 1 : i32
    %403 = tpu.dynamic_rotate %391 by %c1_i32_122 dim 1 : vector<16x128xf32>, i32 -> vector<16x128xf32>
    %404 = vector.broadcast %402 : f32 to vector<16x128xf32>
    %405 = arith.mulf %404, %403 : vector<16x128xf32>
    %406 = arith.addf %401, %405 : vector<16x128xf32>
    %c73 = arith.constant 73 : index
    %407 = memref.load %arg2[%c73] : memref<98xf32, #tpu.memory_space<smem>>
    %408 = vector.broadcast %407 : f32 to vector<16x128xf32>
    %409 = arith.mulf %408, %391 : vector<16x128xf32>
    %410 = arith.addf %406, %409 : vector<16x128xf32>
    %c74 = arith.constant 74 : index
    %411 = memref.load %arg2[%c74] : memref<98xf32, #tpu.memory_space<smem>>
    %c127_i32_123 = arith.constant 127 : i32
    %412 = tpu.dynamic_rotate %391 by %c127_i32_123 dim 1 : vector<16x128xf32>, i32 -> vector<16x128xf32>
    %413 = vector.broadcast %411 : f32 to vector<16x128xf32>
    %414 = arith.mulf %413, %412 : vector<16x128xf32>
    %415 = arith.addf %410, %414 : vector<16x128xf32>
    %c75 = arith.constant 75 : index
    %416 = memref.load %arg2[%c75] : memref<98xf32, #tpu.memory_space<smem>>
    %c126_i32_124 = arith.constant 126 : i32
    %417 = tpu.dynamic_rotate %391 by %c126_i32_124 dim 1 : vector<16x128xf32>, i32 -> vector<16x128xf32>
    %418 = vector.broadcast %416 : f32 to vector<16x128xf32>
    %419 = arith.mulf %418, %417 : vector<16x128xf32>
    %420 = arith.addf %415, %419 : vector<16x128xf32>
    %c76 = arith.constant 76 : index
    %421 = memref.load %arg2[%c76] : memref<98xf32, #tpu.memory_space<smem>>
    %c125_i32_125 = arith.constant 125 : i32
    %422 = tpu.dynamic_rotate %391 by %c125_i32_125 dim 1 : vector<16x128xf32>, i32 -> vector<16x128xf32>
    %423 = vector.broadcast %421 : f32 to vector<16x128xf32>
    %424 = arith.mulf %423, %422 : vector<16x128xf32>
    %425 = arith.addf %420, %424 : vector<16x128xf32>
    %c1_126 = arith.constant 1 : index
    %c4_127 = arith.constant 4 : index
    %c0_128 = arith.constant 0 : index
    %426 = vector.load %arg5[%c1_126, %c4_127, %c0_128] : memref<2x24x128xf32, #tpu.memory_space<vmem>>, vector<1x16x128xf32>
    %427 = vector.shape_cast %426 : vector<1x16x128xf32> to vector<16x128xf32>
    %c77 = arith.constant 77 : index
    %428 = memref.load %arg2[%c77] : memref<98xf32, #tpu.memory_space<smem>>
    %c3_i32_129 = arith.constant 3 : i32
    %429 = tpu.dynamic_rotate %427 by %c3_i32_129 dim 1 : vector<16x128xf32>, i32 -> vector<16x128xf32>
    %430 = vector.broadcast %428 : f32 to vector<16x128xf32>
    %431 = arith.mulf %430, %429 : vector<16x128xf32>
    %432 = arith.addf %389, %431 : vector<16x128xf32>
    %c78 = arith.constant 78 : index
    %433 = memref.load %arg2[%c78] : memref<98xf32, #tpu.memory_space<smem>>
    %c2_i32_130 = arith.constant 2 : i32
    %434 = tpu.dynamic_rotate %427 by %c2_i32_130 dim 1 : vector<16x128xf32>, i32 -> vector<16x128xf32>
    %435 = vector.broadcast %433 : f32 to vector<16x128xf32>
    %436 = arith.mulf %435, %434 : vector<16x128xf32>
    %437 = arith.addf %432, %436 : vector<16x128xf32>
    %c79 = arith.constant 79 : index
    %438 = memref.load %arg2[%c79] : memref<98xf32, #tpu.memory_space<smem>>
    %c1_i32_131 = arith.constant 1 : i32
    %439 = tpu.dynamic_rotate %427 by %c1_i32_131 dim 1 : vector<16x128xf32>, i32 -> vector<16x128xf32>
    %440 = vector.broadcast %438 : f32 to vector<16x128xf32>
    %441 = arith.mulf %440, %439 : vector<16x128xf32>
    %442 = arith.addf %437, %441 : vector<16x128xf32>
    %c80 = arith.constant 80 : index
    %443 = memref.load %arg2[%c80] : memref<98xf32, #tpu.memory_space<smem>>
    %444 = vector.broadcast %443 : f32 to vector<16x128xf32>
    %445 = arith.mulf %444, %427 : vector<16x128xf32>
    %446 = arith.addf %442, %445 : vector<16x128xf32>
    %c81 = arith.constant 81 : index
    %447 = memref.load %arg2[%c81] : memref<98xf32, #tpu.memory_space<smem>>
    %c127_i32_132 = arith.constant 127 : i32
    %448 = tpu.dynamic_rotate %427 by %c127_i32_132 dim 1 : vector<16x128xf32>, i32 -> vector<16x128xf32>
    %449 = vector.broadcast %447 : f32 to vector<16x128xf32>
    %450 = arith.mulf %449, %448 : vector<16x128xf32>
    %451 = arith.addf %446, %450 : vector<16x128xf32>
    %c82 = arith.constant 82 : index
    %452 = memref.load %arg2[%c82] : memref<98xf32, #tpu.memory_space<smem>>
    %c126_i32_133 = arith.constant 126 : i32
    %453 = tpu.dynamic_rotate %427 by %c126_i32_133 dim 1 : vector<16x128xf32>, i32 -> vector<16x128xf32>
    %454 = vector.broadcast %452 : f32 to vector<16x128xf32>
    %455 = arith.mulf %454, %453 : vector<16x128xf32>
    %456 = arith.addf %451, %455 : vector<16x128xf32>
    %c83 = arith.constant 83 : index
    %457 = memref.load %arg2[%c83] : memref<98xf32, #tpu.memory_space<smem>>
    %c125_i32_134 = arith.constant 125 : i32
    %458 = tpu.dynamic_rotate %427 by %c125_i32_134 dim 1 : vector<16x128xf32>, i32 -> vector<16x128xf32>
    %459 = vector.broadcast %457 : f32 to vector<16x128xf32>
    %460 = arith.mulf %459, %458 : vector<16x128xf32>
    %461 = arith.addf %456, %460 : vector<16x128xf32>
    %c1_135 = arith.constant 1 : index
    %c5_136 = arith.constant 5 : index
    %c0_137 = arith.constant 0 : index
    %462 = vector.load %arg5[%c1_135, %c5_136, %c0_137] : memref<2x24x128xf32, #tpu.memory_space<vmem>>, vector<1x16x128xf32>
    %463 = vector.shape_cast %462 : vector<1x16x128xf32> to vector<16x128xf32>
    %c84 = arith.constant 84 : index
    %464 = memref.load %arg2[%c84] : memref<98xf32, #tpu.memory_space<smem>>
    %c3_i32_138 = arith.constant 3 : i32
    %465 = tpu.dynamic_rotate %463 by %c3_i32_138 dim 1 : vector<16x128xf32>, i32 -> vector<16x128xf32>
    %466 = vector.broadcast %464 : f32 to vector<16x128xf32>
    %467 = arith.mulf %466, %465 : vector<16x128xf32>
    %468 = arith.addf %425, %467 : vector<16x128xf32>
    %c85 = arith.constant 85 : index
    %469 = memref.load %arg2[%c85] : memref<98xf32, #tpu.memory_space<smem>>
    %c2_i32_139 = arith.constant 2 : i32
    %470 = tpu.dynamic_rotate %463 by %c2_i32_139 dim 1 : vector<16x128xf32>, i32 -> vector<16x128xf32>
    %471 = vector.broadcast %469 : f32 to vector<16x128xf32>
    %472 = arith.mulf %471, %470 : vector<16x128xf32>
    %473 = arith.addf %468, %472 : vector<16x128xf32>
    %c86 = arith.constant 86 : index
    %474 = memref.load %arg2[%c86] : memref<98xf32, #tpu.memory_space<smem>>
    %c1_i32_140 = arith.constant 1 : i32
    %475 = tpu.dynamic_rotate %463 by %c1_i32_140 dim 1 : vector<16x128xf32>, i32 -> vector<16x128xf32>
    %476 = vector.broadcast %474 : f32 to vector<16x128xf32>
    %477 = arith.mulf %476, %475 : vector<16x128xf32>
    %478 = arith.addf %473, %477 : vector<16x128xf32>
    %c87 = arith.constant 87 : index
    %479 = memref.load %arg2[%c87] : memref<98xf32, #tpu.memory_space<smem>>
    %480 = vector.broadcast %479 : f32 to vector<16x128xf32>
    %481 = arith.mulf %480, %463 : vector<16x128xf32>
    %482 = arith.addf %478, %481 : vector<16x128xf32>
    %c88 = arith.constant 88 : index
    %483 = memref.load %arg2[%c88] : memref<98xf32, #tpu.memory_space<smem>>
    %c127_i32_141 = arith.constant 127 : i32
    %484 = tpu.dynamic_rotate %463 by %c127_i32_141 dim 1 : vector<16x128xf32>, i32 -> vector<16x128xf32>
    %485 = vector.broadcast %483 : f32 to vector<16x128xf32>
    %486 = arith.mulf %485, %484 : vector<16x128xf32>
    %487 = arith.addf %482, %486 : vector<16x128xf32>
    %c89 = arith.constant 89 : index
    %488 = memref.load %arg2[%c89] : memref<98xf32, #tpu.memory_space<smem>>
    %c126_i32_142 = arith.constant 126 : i32
    %489 = tpu.dynamic_rotate %463 by %c126_i32_142 dim 1 : vector<16x128xf32>, i32 -> vector<16x128xf32>
    %490 = vector.broadcast %488 : f32 to vector<16x128xf32>
    %491 = arith.mulf %490, %489 : vector<16x128xf32>
    %492 = arith.addf %487, %491 : vector<16x128xf32>
    %c90 = arith.constant 90 : index
    %493 = memref.load %arg2[%c90] : memref<98xf32, #tpu.memory_space<smem>>
    %c125_i32_143 = arith.constant 125 : i32
    %494 = tpu.dynamic_rotate %463 by %c125_i32_143 dim 1 : vector<16x128xf32>, i32 -> vector<16x128xf32>
    %495 = vector.broadcast %493 : f32 to vector<16x128xf32>
    %496 = arith.mulf %495, %494 : vector<16x128xf32>
    %497 = arith.addf %492, %496 : vector<16x128xf32>
    %c1_144 = arith.constant 1 : index
    %c6_145 = arith.constant 6 : index
    %c0_146 = arith.constant 0 : index
    %498 = vector.load %arg5[%c1_144, %c6_145, %c0_146] : memref<2x24x128xf32, #tpu.memory_space<vmem>>, vector<1x16x128xf32>
    %499 = vector.shape_cast %498 : vector<1x16x128xf32> to vector<16x128xf32>
    %c91 = arith.constant 91 : index
    %500 = memref.load %arg2[%c91] : memref<98xf32, #tpu.memory_space<smem>>
    %c3_i32_147 = arith.constant 3 : i32
    %501 = tpu.dynamic_rotate %499 by %c3_i32_147 dim 1 : vector<16x128xf32>, i32 -> vector<16x128xf32>
    %502 = vector.broadcast %500 : f32 to vector<16x128xf32>
    %503 = arith.mulf %502, %501 : vector<16x128xf32>
    %504 = arith.addf %461, %503 : vector<16x128xf32>
    %c92 = arith.constant 92 : index
    %505 = memref.load %arg2[%c92] : memref<98xf32, #tpu.memory_space<smem>>
    %c2_i32_148 = arith.constant 2 : i32
    %506 = tpu.dynamic_rotate %499 by %c2_i32_148 dim 1 : vector<16x128xf32>, i32 -> vector<16x128xf32>
    %507 = vector.broadcast %505 : f32 to vector<16x128xf32>
    %508 = arith.mulf %507, %506 : vector<16x128xf32>
    %509 = arith.addf %504, %508 : vector<16x128xf32>
    %c93 = arith.constant 93 : index
    %510 = memref.load %arg2[%c93] : memref<98xf32, #tpu.memory_space<smem>>
    %c1_i32_149 = arith.constant 1 : i32
    %511 = tpu.dynamic_rotate %499 by %c1_i32_149 dim 1 : vector<16x128xf32>, i32 -> vector<16x128xf32>
    %512 = vector.broadcast %510 : f32 to vector<16x128xf32>
    %513 = arith.mulf %512, %511 : vector<16x128xf32>
    %514 = arith.addf %509, %513 : vector<16x128xf32>
    %c94 = arith.constant 94 : index
    %515 = memref.load %arg2[%c94] : memref<98xf32, #tpu.memory_space<smem>>
    %516 = vector.broadcast %515 : f32 to vector<16x128xf32>
    %517 = arith.mulf %516, %499 : vector<16x128xf32>
    %518 = arith.addf %514, %517 : vector<16x128xf32>
    %c95 = arith.constant 95 : index
    %519 = memref.load %arg2[%c95] : memref<98xf32, #tpu.memory_space<smem>>
    %c127_i32_150 = arith.constant 127 : i32
    %520 = tpu.dynamic_rotate %499 by %c127_i32_150 dim 1 : vector<16x128xf32>, i32 -> vector<16x128xf32>
    %521 = vector.broadcast %519 : f32 to vector<16x128xf32>
    %522 = arith.mulf %521, %520 : vector<16x128xf32>
    %523 = arith.addf %518, %522 : vector<16x128xf32>
    %c96 = arith.constant 96 : index
    %524 = memref.load %arg2[%c96] : memref<98xf32, #tpu.memory_space<smem>>
    %c126_i32_151 = arith.constant 126 : i32
    %525 = tpu.dynamic_rotate %499 by %c126_i32_151 dim 1 : vector<16x128xf32>, i32 -> vector<16x128xf32>
    %526 = vector.broadcast %524 : f32 to vector<16x128xf32>
    %527 = arith.mulf %526, %525 : vector<16x128xf32>
    %528 = arith.addf %523, %527 : vector<16x128xf32>
    %c97 = arith.constant 97 : index
    %529 = memref.load %arg2[%c97] : memref<98xf32, #tpu.memory_space<smem>>
    %c125_i32_152 = arith.constant 125 : i32
    %530 = tpu.dynamic_rotate %499 by %c125_i32_152 dim 1 : vector<16x128xf32>, i32 -> vector<16x128xf32>
    %531 = vector.broadcast %529 : f32 to vector<16x128xf32>
    %532 = arith.mulf %531, %530 : vector<16x128xf32>
    %533 = arith.addf %528, %532 : vector<16x128xf32>
    %534 = arith.addf %281, %245 : vector<16x128xf32>
    %535 = arith.addf %533, %497 : vector<16x128xf32>
    %536 = arith.addf %534, %535 : vector<16x128xf32>
    %c0_153 = arith.constant 0 : index
    %537 = memref.load %arg3[%c0_153] : memref<1xf32, #tpu.memory_space<smem>>
    %538 = vector.broadcast %537 : f32 to vector<16x128xf32>
    %539 = arith.addf %536, %538 : vector<16x128xf32>
    %540 = arith.negf %539 : vector<16x128xf32>
    %541 = math.exp %540 : vector<16x128xf32>
    %cst_154 = arith.constant 1.000000e+00 : f32
    %542 = vector.broadcast %cst_154 : f32 to vector<16x128xf32>
    %543 = arith.addf %542, %541 : vector<16x128xf32>
    %544 = arith.divf %542, %543 : vector<16x128xf32>
    %c0_155 = arith.constant 0 : index
    %c0_156 = arith.constant 0 : index
    %c0_157 = arith.constant 0 : index
    %545 = vector.load %arg4[%c0_155, %c0_156, %c0_157] : memref<1x16x128xf32, #tpu.memory_space<vmem>>, vector<1x16x128xf32>
    %546 = vector.shape_cast %545 : vector<1x16x128xf32> to vector<16x128xf32>
    %547 = vector.shape_cast %544 : vector<16x128xf32> to vector<1x16x128xf32>
    tpu.vector_store %arg4[%c0_155, %c0_156, %c0_157], %547 {strides = array<i32>} : memref<1x16x128xf32, #tpu.memory_space<vmem>>, vector<1x16x128xf32>,
    return
  }
  func.func @transform_0(%arg0: i32) -> (i32, i32, i32, i32) {
    %c0_i32 = arith.constant 0 : i32
    %c0_i32_0 = arith.constant 0 : i32
    %c0_i32_1 = arith.constant 0 : i32
    %c0_i32_2 = arith.constant 0 : i32
    return %arg0, %c0_i32, %c0_i32_0, %c0_i32_1 : i32, i32, i32, i32
  }
  func.func @transform_1(%arg0: i32) -> i32 {
    %c0_i32 = arith.constant 0 : i32
    %c0_i32_0 = arith.constant 0 : i32
    return %c0_i32 : i32
  }
  func.func @transform_2(%arg0: i32) -> i32 {
    %c0_i32 = arith.constant 0 : i32
    %c0_i32_0 = arith.constant 0 : i32
    return %c0_i32 : i32
  }
  func.func @transform_3(%arg0: i32) -> (i32, i32, i32) {
    %c0_i32 = arith.constant 0 : i32
    %c0_i32_0 = arith.constant 0 : i32
    %c0_i32_1 = arith.constant 0 : i32
    return %arg0, %c0_i32, %c0_i32_0 : i32, i32, i32
  }
}

</mosaic_0001>

<llo_original>
// kernel: tpu_custom_call.1
$region0: #{tpu_custom_call.1}
  #allocation0 [shape = 'u32[]', space=smem, size = 0x4, offset = 0x4, fixed_abs, tag = 'smem constant byte address 0x4 - core index']
  #allocation1 [shape = 'u32[144,128]{1,0:T(1,128)}', space=vmem, size = 0x12000, scoped, tag = 'internal scratch']
  #allocation2 [shape = 'f32[2,24,128]{2,1,0:T(8,128)}', space=vmem, size = 0x6000, scoped, tag = 'scratch operand']
  #allocation3 [shape = 'f32[1]{0:T(128)S(6)}', space=smem, size = 0x200, scoped, tag = 'scoped memory for tpu_custom_call.1']
  %s0 = inlined_call_operand.hbm [shape: f32[2,4,16,16], index: 0, kind: input, shape index: {}]
  %s1 = inlined_call_operand.vmem [shape: f32[98], index: 1, kind: input, shape index: {}]
  %s2 = inlined_call_operand.<no memory space> [shape: f32[1], index: 2, kind: input, shape index: {}]
  %s3 = inlined_call_operand.hbm [shape: f32[1,16,128], index: 3, kind: output, shape index: {}]
  %s4 = sld [smem:[#allocation0]]
  $region30: #{tpu_custom_call.1} parent=0
    _
  %s6 = ssub.s32 1, %s4
  %s7 = scalar_select 0, %s6, %s4
  %8 = sst [smem:[#allocation3]] %s2
  $region1: #{tpu_custom_call.1} parent=0
    #allocation4 [shape = 'u8[65536]{0}', space=vmem, size = 0x10000, scoped, tag = 'input window, operand 0, single buffered']
    #allocation5 [shape = 's32[1]{0}', space=sflag, size = 0x4, scoped, tag = 'scoped memory for tpu_custom_call.1']
    #allocation6 [shape = 's32[1]{0}', space=sflag, size = 0x4, scoped, tag = 'scoped memory for tpu_custom_call.1']
    #allocation7 [shape = 's32[1]{0}', space=sflag, size = 0x4, scoped, tag = 'scoped memory for tpu_custom_call.1']
    #allocation8 [shape = 'u8[512]{0}', space=smem, size = 0x200, scoped, tag = 'input window, operand 1, single buffered']
    #allocation9 [shape = 'u8[8192]{0}', space=vmem, size = 0x2000, scoped, tag = 'output window, operand 0, single buffered']
    %9 = vsyncpa [#allocation5], 0
    %10 = vsyncpa [#allocation7], 0
    %11 = vsyncpa [#allocation6], 0
    // Predicated region
    $region2: #{tpu_custom_call.1} parent=1 // pred_check
      _
    $region3: #{tpu_custom_call.1} parent=1 // pred_check_branch
      %13 = sbr.rel (0) target = $region5
    $region4: #{tpu_custom_call.1} parent=1 // pred_region
      %s15 = ssub.s32 2048, 2048
      %16 = vsyncadd [#allocation5], %s15
      %s17 = sshll.u32 [#allocation4], 4
      %s18 = int_to_ptr.vmem [resolvable:$true] %s17
      %23 = dma.hbm_to_vmem [thread:$0]  %s0, 2048, %s18, [#allocation5], 128, 128, 8
    $region5: #{tpu_custom_call.1} parent=1 // pred_fallthru
      _
    // Predicated region
    $region6: #{tpu_custom_call.1} parent=1 // pred_check
      _
    $region7: #{tpu_custom_call.1} parent=1 // pred_check_branch
      %25 = sbr.rel (0) target = $region9
    $region8: #{tpu_custom_call.1} parent=1 // pred_region
      %s27 = ssub.s32 16, 16
      %28 = vsyncadd [#allocation7], %s27
      %s30 = sshll.u32 %s1, 4
      %s31 = int_to_ptr.vmem [resolvable:$true] %s30
      %33 = dma.vmem_to_smem %s31, 16, [#allocation8], [#allocation7]
    $region9: #{tpu_custom_call.1} parent=1 // pred_fallthru
      _
    // Predicated region
    $region10: #{tpu_custom_call.1} parent=1 // pred_check
      _
    $region11: #{tpu_custom_call.1} parent=1 // pred_check_branch
      %35 = sbr.rel (0) target = $region13
    $region12: #{tpu_custom_call.1} parent=1 // pred_region
      _
    $region13: #{tpu_custom_call.1} parent=1 // pred_fallthru
      _
    // Predicated region
    $region14: #{tpu_custom_call.1} parent=1 // pred_check
      _
    $region15: #{tpu_custom_call.1} parent=1 // pred_check_branch
      %37 = sbr.rel (0) target = $region17
    $region16: #{tpu_custom_call.1} parent=1 // pred_region
      %38 = dma.done [#allocation5], 2048
    $region17: #{tpu_custom_call.1} parent=1 // pred_fallthru
      _
    // Predicated region
    $region18: #{tpu_custom_call.1} parent=1 // pred_check
      _
    $region19: #{tpu_custom_call.1} parent=1 // pred_check_branch
      %40 = sbr.rel (0) target = $region21
    $region20: #{tpu_custom_call.1} parent=1 // pred_region
      %41 = dma.done [#allocation7], 16
    $region21: #{tpu_custom_call.1} parent=1 // pred_fallthru
      _
    %42 = sfence
    %43 = vst [vmem:[#allocation2] sm:$0xff] 0.0
    %44 = vst [vmem:[#allocation2 + $0x8] sm:$0xff] 0.0
    %45 = vst [vmem:[#allocation2 + $0x10] sm:$0xff] 0.0
    %46 = vst [vmem:[#allocation2 + $0x18] sm:$0xff] 0.0
    %47 = vst [vmem:[#allocation2 + $0x20] sm:$0xff] 0.0
    %48 = vst [vmem:[#allocation2 + $0x28] sm:$0xff] 0.0
    %v49 = vld [vmem:[#allocation4] sm:$0xff]
    %v50 = vld [vmem:[#allocation4 + $0x8] sm:$0xff]
    %v51 = vld [vmem:[#allocation4 + $0x10] sm:$0xff]
    %v52 = vld [vmem:[#allocation4 + $0x18] sm:$0xff]
    %v53 = vld [vmem:[#allocation4 + $0x20] sm:$0xff]
    %v54 = vld [vmem:[#allocation4 + $0x28] sm:$0xff]
    %v55 = vld [vmem:[#allocation4 + $0x30] sm:$0xff]
    %v56 = vld [vmem:[#allocation4 + $0x38] sm:$0xff]
    %vm57 = vcmask 130048
    %v58 = vsel %vm57, %v49, -inf
    %v59 = vsel %vm57, %v51, -inf
    %v60 = vsel %vm57, %v53, -inf
    %v61 = vmax.f32 %v58, %v60
    %v62 = vsel %vm57, %v55, -inf
    %v63 = vmax.f32 %v59, %v62
    %v64 = vmax.f32 %v61, %v63
    %v65 = vsel %vm57, %v50, -inf
    %v66 = vsel %vm57, %v52, -inf
    %v67 = vsel %vm57, %v54, -inf
    %v68 = vmax.f32 %v65, %v67
    %v69 = vsel %vm57, %v56, -inf
    %v70 = vmax.f32 %v66, %v69
    %v71 = vmax.f32 %v68, %v70
    %v72 = vsel %vm57, %v49, 0.0
    %v73 = vsel %vm57, %v51, 0.0
    %v74 = vadd.f32 %v72, %v73
    %v75 = vsel %vm57, %v53, 0.0
    %v76 = vadd.f32 %v74, %v75
    %v77 = vsel %vm57, %v55, 0.0
    %v78 = vadd.f32 %v76, %v77
    %v79 = vsel %vm57, %v50, 0.0
    %v80 = vsel %vm57, %v52, 0.0
    %v81 = vadd.f32 %v79, %v80
    %v82 = vsel %vm57, %v54, 0.0
    %v83 = vadd.f32 %v81, %v82
    %v84 = vsel %vm57, %v56, 0.0
    %v85 = vadd.f32 %v83, %v84
    %v86 = vmul.f32 %v78, 0.25
    %v87 = vmul.f32 %v85, 0.25
    %90 = vrot.lane.b32.xlu0 %v64, 3
    %v91 = vpop.permute.xlu0 %90
    %92 = vrot.lane.b32.xlu0 %v71, 3
    %v93 = vpop.permute.xlu0 %92
    %vm96 = vcmask 154648
    %97 = vst.msk [vmem:[#allocation2 + $0x3] sm:$0xff] %vm96, %v91
    %98 = vst.msk [vmem:[#allocation2 + $0xb] sm:$0xff] %vm96, %v93
    %101 = vrot.lane.b32.xlu0 %v86, 3
    %v102 = vpop.permute.xlu0 %101
    %103 = vrot.lane.b32.xlu0 %v87, 3
    %v104 = vpop.permute.xlu0 %103
    %s107 = scalar_lea.vmem [#allocation2], 24
    %108 = vst.msk [vmem:[%s107 + $0x3] sm:$0xff] %vm96, %v102
    %109 = vst.msk [vmem:[%s107 + $0xb] sm:$0xff] %vm96, %v104
    %s110 = scalar_lea.vmem [#allocation4], 64
    %v111 = vld [vmem:[%s110] sm:$0xff]
    %v112 = vld [vmem:[%s110 + $0x8] sm:$0xff]
    %v113 = vld [vmem:[%s110 + $0x10] sm:$0xff]
    %v114 = vld [vmem:[%s110 + $0x18] sm:$0xff]
    %v115 = vld [vmem:[%s110 + $0x20] sm:$0xff]
    %v116 = vld [vmem:[%s110 + $0x28] sm:$0xff]
    %v117 = vld [vmem:[%s110 + $0x30] sm:$0xff]
    %v118 = vld [vmem:[%s110 + $0x38] sm:$0xff]
    %v119 = vsel %vm57, %v111, -inf
    %v120 = vsel %vm57, %v113, -inf
    %v121 = vsel %vm57, %v115, -inf
    %v122 = vmax.f32 %v119, %v121
    %v123 = vsel %vm57, %v117, -inf
    %v124 = vmax.f32 %v120, %v123
    %v125 = vmax.f32 %v122, %v124
    %v126 = vsel %vm57, %v112, -inf
    %v127 = vsel %vm57, %v114, -inf
    %v128 = vsel %vm57, %v116, -inf
    %v129 = vmax.f32 %v126, %v128
    %v130 = vsel %vm57, %v118, -inf
    %v131 = vmax.f32 %v127, %v130
    %v132 = vmax.f32 %v129, %v131
    %v133 = vsel %vm57, %v111, 0.0
    %v134 = vsel %vm57, %v113, 0.0
    %v135 = vadd.f32 %v133, %v134
    %v136 = vsel %vm57, %v115, 0.0
    %v137 = vadd.f32 %v135, %v136
    %v138 = vsel %vm57, %v117, 0.0
    %v139 = vadd.f32 %v137, %v138
    %v140 = vsel %vm57, %v112, 0.0
    %v141 = vsel %vm57, %v114, 0.0
    %v142 = vadd.f32 %v140, %v141
    %v143 = vsel %vm57, %v116, 0.0
    %v144 = vadd.f32 %v142, %v143
    %v145 = vsel %vm57, %v118, 0.0
    %v146 = vadd.f32 %v144, %v145
    %v147 = vmul.f32 %v139, 0.25
    %v148 = vmul.f32 %v146, 0.25
    %151 = vrot.lane.b32.xlu0 %v125, 25
    %v152 = vpop.permute.xlu0 %151
    %153 = vrot.lane.b32.xlu0 %v132, 25
    %v154 = vpop.permute.xlu0 %153
    %vm157 = vcmask 335048
    %158 = vst.msk [vmem:[#allocation2 + $0x3] sm:$0xff] %vm157, %v152
    %159 = vst.msk [vmem:[#allocation2 + $0xb] sm:$0xff] %vm157, %v154
    %162 = vrot.lane.b32.xlu0 %v147, 25
    %v163 = vpop.permute.xlu0 %162
    %164 = vrot.lane.b32.xlu0 %v148, 25
    %v165 = vpop.permute.xlu0 %164
    %168 = vst.msk [vmem:[%s107 + $0x3] sm:$0xff] %vm157, %v163
    %169 = vst.msk [vmem:[%s107 + $0xb] sm:$0xff] %vm157, %v165
    %v170 = vld [vmem:[#allocation2] sm:$0xff]
    %v171 = vld [vmem:[#allocation2 + $0x8] sm:$0xff]
    %s172 = sld [smem:[#allocation8]]
    %173 = vrot.lane.b32.xlu0 %v170, 3
    %v174 = vpop.permute.xlu0 %173
    %175 = vrot.lane.b32.xlu0 %v171, 3
    %v176 = vpop.permute.xlu0 %175
    %v177 = vstv %s172
    %v178 = vmul.f32 %v177, %v174
    %v179 = vmul.f32 %v177, %v176
    %v180 = vadd.f32 %v178, 0.0
    %v181 = vadd.f32 %v179, 0.0
    %s182 = sld [smem:[#allocation8 + $0x1]]
    %183 = vrot.lane.b32.xlu0 %v170, 2
    %v184 = vpop.permute.xlu0 %183
    %185 = vrot.lane.b32.xlu0 %v171, 2
    %v186 = vpop.permute.xlu0 %185
    %v187 = vstv %s182
    %v188 = vmul.f32 %v187, %v184
    %v189 = vmul.f32 %v187, %v186
    %v190 = vadd.f32 %v180, %v188
    %v191 = vadd.f32 %v181, %v189
    %s192 = sld [smem:[#allocation8 + $0x2]]
    %193 = vrot.lane.b32.xlu0 %v170, 1
    %v194 = vpop.permute.xlu0 %193
    %195 = vrot.lane.b32.xlu0 %v171, 1
    %v196 = vpop.permute.xlu0 %195
    %v197 = vstv %s192
    %v198 = vmul.f32 %v197, %v194
    %v199 = vmul.f32 %v197, %v196
    %v200 = vadd.f32 %v190, %v198
    %v201 = vadd.f32 %v191, %v199
    %s202 = sld [smem:[#allocation8 + $0x3]]
    %v203 = vstv %s202
    %v204 = vmul.f32 %v203, %v170
    %v205 = vmul.f32 %v203, %v171
    %v206 = vadd.f32 %v200, %v204
    %v207 = vadd.f32 %v201, %v205
    %s208 = sld [smem:[#allocation8 + $0x4]]
    %209 = vrot.lane.b32.xlu0 %v170, 127
    %v210 = vpop.permute.xlu0 %209
    %211 = vrot.lane.b32.xlu0 %v171, 127
    %v212 = vpop.permute.xlu0 %211
    %v213 = vstv %s208
    %v214 = vmul.f32 %v213, %v210
    %v215 = vmul.f32 %v213, %v212
    %v216 = vadd.f32 %v206, %v214
    %v217 = vadd.f32 %v207, %v215
    %s218 = sld [smem:[#allocation8 + $0x5]]
    %219 = vrot.lane.b32.xlu0 %v170, 126
    %v220 = vpop.permute.xlu0 %219
    %221 = vrot.lane.b32.xlu0 %v171, 126
    %v222 = vpop.permute.xlu0 %221
    %v223 = vstv %s218
    %v224 = vmul.f32 %v223, %v220
    %v225 = vmul.f32 %v223, %v222
    %v226 = vadd.f32 %v216, %v224
    %v227 = vadd.f32 %v217, %v225
    %s228 = sld [smem:[#allocation8 + $0x6]]
    %229 = vrot.lane.b32.xlu0 %v170, 125
    %v230 = vpop.permute.xlu0 %229
    %231 = vrot.lane.b32.xlu0 %v171, 125
    %v232 = vpop.permute.xlu0 %231
    %v233 = vstv %s228
    %v234 = vmul.f32 %v233, %v230
    %v235 = vmul.f32 %v233, %v232
    %v236 = vadd.f32 %v226, %v234
    %v237 = vadd.f32 %v227, %v235
    %v238 = vld [vmem:[#allocation2 + $0x1] sm:$0xff]
    %v239 = vld [vmem:[#allocation2 + $0x9] sm:$0xff]
    %s240 = sld [smem:[#allocation8 + $0x7]]
    %241 = vrot.lane.b32.xlu0 %v238, 3
    %v242 = vpop.permute.xlu0 %241
    %243 = vrot.lane.b32.xlu0 %v239, 3
    %v244 = vpop.permute.xlu0 %243
    %v245 = vstv %s240
    %v246 = vmul.f32 %v245, %v242
    %v247 = vmul.f32 %v245, %v244
    %v248 = vadd.f32 %v246, 0.0
    %v249 = vadd.f32 %v247, 0.0
    %s250 = sld [smem:[#allocation8 + $0x8]]
    %251 = vrot.lane.b32.xlu0 %v238, 2
    %v252 = vpop.permute.xlu0 %251
    %253 = vrot.lane.b32.xlu0 %v239, 2
    %v254 = vpop.permute.xlu0 %253
    %v255 = vstv %s250
    %v256 = vmul.f32 %v255, %v252
    %v257 = vmul.f32 %v255, %v254
    %v258 = vadd.f32 %v248, %v256
    %v259 = vadd.f32 %v249, %v257
    %s260 = sld [smem:[#allocation8 + $0x9]]
    %261 = vrot.lane.b32.xlu0 %v238, 1
    %v262 = vpop.permute.xlu0 %261
    %263 = vrot.lane.b32.xlu0 %v239, 1
    %v264 = vpop.permute.xlu0 %263
    %v265 = vstv %s260
    %v266 = vmul.f32 %v265, %v262
    %v267 = vmul.f32 %v265, %v264
    %v268 = vadd.f32 %v258, %v266
    %v269 = vadd.f32 %v259, %v267
    %s270 = sld [smem:[#allocation8 + $0xa]]
    %v271 = vstv %s270
    %v272 = vmul.f32 %v271, %v238
    %v273 = vmul.f32 %v271, %v239
    %v274 = vadd.f32 %v268, %v272
    %v275 = vadd.f32 %v269, %v273
    %s276 = sld [smem:[#allocation8 + $0xb]]
    %277 = vrot.lane.b32.xlu0 %v238, 127
    %v278 = vpop.permute.xlu0 %277
    %279 = vrot.lane.b32.xlu0 %v239, 127
    %v280 = vpop.permute.xlu0 %279
    %v281 = vstv %s276
    %v282 = vmul.f32 %v281, %v278
    %v283 = vmul.f32 %v281, %v280
    %v284 = vadd.f32 %v274, %v282
    %v285 = vadd.f32 %v275, %v283
    %s286 = sld [smem:[#allocation8 + $0xc]]
    %287 = vrot.lane.b32.xlu0 %v238, 126
    %v288 = vpop.permute.xlu0 %287
    %289 = vrot.lane.b32.xlu0 %v239, 126
    %v290 = vpop.permute.xlu0 %289
    %v291 = vstv %s286
    %v292 = vmul.f32 %v291, %v288
    %v293 = vmul.f32 %v291, %v290
    %v294 = vadd.f32 %v284, %v292
    %v295 = vadd.f32 %v285, %v293
    %s296 = sld [smem:[#allocation8 + $0xd]]
    %297 = vrot.lane.b32.xlu0 %v238, 125
    %v298 = vpop.permute.xlu0 %297
    %299 = vrot.lane.b32.xlu0 %v239, 125
    %v300 = vpop.permute.xlu0 %299
    %v301 = vstv %s296
    %v302 = vmul.f32 %v301, %v298
    %v303 = vmul.f32 %v301, %v300
    %v304 = vadd.f32 %v294, %v302
    %v305 = vadd.f32 %v295, %v303
    %v306 = vld [vmem:[#allocation2 + $0x2] sm:$0xff]
    %v307 = vld [vmem:[#allocation2 + $0xa] sm:$0xff]
    %s308 = sld [smem:[#allocation8 + $0xe]]
    %309 = vrot.lane.b32.xlu0 %v306, 3
    %v310 = vpop.permute.xlu0 %309
    %311 = vrot.lane.b32.xlu0 %v307, 3
    %v312 = vpop.permute.xlu0 %311
    %v313 = vstv %s308
    %v314 = vmul.f32 %v313, %v310
    %v315 = vmul.f32 %v313, %v312
    %v316 = vadd.f32 %v236, %v314
    %v317 = vadd.f32 %v237, %v315
    %s318 = sld [smem:[#allocation8 + $0xf]]
    %319 = vrot.lane.b32.xlu0 %v306, 2
    %v320 = vpop.permute.xlu0 %319
    %321 = vrot.lane.b32.xlu0 %v307, 2
    %v322 = vpop.permute.xlu0 %321
    %v323 = vstv %s318
    %v324 = vmul.f32 %v323, %v320
    %v325 = vmul.f32 %v323, %v322
    %v326 = vadd.f32 %v316, %v324
    %v327 = vadd.f32 %v317, %v325
    %s328 = sld [smem:[#allocation8 + $0x10]]
    %329 = vrot.lane.b32.xlu0 %v306, 1
    %v330 = vpop.permute.xlu0 %329
    %331 = vrot.lane.b32.xlu0 %v307, 1
    %v332 = vpop.permute.xlu0 %331
    %v333 = vstv %s328
    %v334 = vmul.f32 %v333, %v330
    %v335 = vmul.f32 %v333, %v332
    %v336 = vadd.f32 %v326, %v334
    %v337 = vadd.f32 %v327, %v335
    %s338 = sld [smem:[#allocation8 + $0x11]]
    %v339 = vstv %s338
    %v340 = vmul.f32 %v339, %v306
    %v341 = vmul.f32 %v339, %v307
    %v342 = vadd.f32 %v336, %v340
    %v343 = vadd.f32 %v337, %v341
    %s344 = sld [smem:[#allocation8 + $0x12]]
    %345 = vrot.lane.b32.xlu0 %v306, 127
    %v346 = vpop.permute.xlu0 %345
    %347 = vrot.lane.b32.xlu0 %v307, 127
    %v348 = vpop.permute.xlu0 %347
    %v349 = vstv %s344
    %v350 = vmul.f32 %v349, %v346
    %v351 = vmul.f32 %v349, %v348
    %v352 = vadd.f32 %v342, %v350
    %v353 = vadd.f32 %v343, %v351
    %s354 = sld [smem:[#allocation8 + $0x13]]
    %355 = vrot.lane.b32.xlu0 %v306, 126
    %v356 = vpop.permute.xlu0 %355
    %357 = vrot.lane.b32.xlu0 %v307, 126
    %v358 = vpop.permute.xlu0 %357
    %v359 = vstv %s354
    %v360 = vmul.f32 %v359, %v356
    %v361 = vmul.f32 %v359, %v358
    %v362 = vadd.f32 %v352, %v360
    %v363 = vadd.f32 %v353, %v361
    %s364 = sld [smem:[#allocation8 + $0x14]]
    %365 = vrot.lane.b32.xlu0 %v306, 125
    %v366 = vpop.permute.xlu0 %365
    %367 = vrot.lane.b32.xlu0 %v307, 125
    %v368 = vpop.permute.xlu0 %367
    %v369 = vstv %s364
    %v370 = vmul.f32 %v369, %v366
    %v371 = vmul.f32 %v369, %v368
    %v372 = vadd.f32 %v362, %v370
    %v373 = vadd.f32 %v363, %v371
    %v374 = vld [vmem:[#allocation2 + $0x3] sm:$0xff]
    %v375 = vld [vmem:[#allocation2 + $0xb] sm:$0xff]
    %s376 = sld [smem:[#allocation8 + $0x15]]
    %377 = vrot.lane.b32.xlu0 %v374, 3
    %v378 = vpop.permute.xlu0 %377
    %379 = vrot.lane.b32.xlu0 %v375, 3
    %v380 = vpop.permute.xlu0 %379
    %v381 = vstv %s376
    %v382 = vmul.f32 %v381, %v378
    %v383 = vmul.f32 %v381, %v380
    %v384 = vadd.f32 %v304, %v382
    %v385 = vadd.f32 %v305, %v383
    %s386 = sld [smem:[#allocation8 + $0x16]]
    %387 = vrot.lane.b32.xlu0 %v374, 2
    %v388 = vpop.permute.xlu0 %387
    %389 = vrot.lane.b32.xlu0 %v375, 2
    %v390 = vpop.permute.xlu0 %389
    %v391 = vstv %s386
    %v392 = vmul.f32 %v391, %v388
    %v393 = vmul.f32 %v391, %v390
    %v394 = vadd.f32 %v384, %v392
    %v395 = vadd.f32 %v385, %v393
    %s396 = sld [smem:[#allocation8 + $0x17]]
    %397 = vrot.lane.b32.xlu0 %v374, 1
    %v398 = vpop.permute.xlu0 %397
    %399 = vrot.lane.b32.xlu0 %v375, 1
    %v400 = vpop.permute.xlu0 %399
    %v401 = vstv %s396
    %v402 = vmul.f32 %v401, %v398
    %v403 = vmul.f32 %v401, %v400
    %v404 = vadd.f32 %v394, %v402
    %v405 = vadd.f32 %v395, %v403
    %s406 = sld [smem:[#allocation8 + $0x18]]
    %v407 = vstv %s406
    %v408 = vmul.f32 %v407, %v374
    %v409 = vmul.f32 %v407, %v375
    %v410 = vadd.f32 %v404, %v408
    %v411 = vadd.f32 %v405, %v409
    %s412 = sld [smem:[#allocation8 + $0x19]]
    %413 = vrot.lane.b32.xlu0 %v374, 127
    %v414 = vpop.permute.xlu0 %413
    %415 = vrot.lane.b32.xlu0 %v375, 127
    %v416 = vpop.permute.xlu0 %415
    %v417 = vstv %s412
    %v418 = vmul.f32 %v417, %v414
    %v419 = vmul.f32 %v417, %v416
    %v420 = vadd.f32 %v410, %v418
    %v421 = vadd.f32 %v411, %v419
    %s422 = sld [smem:[#allocation8 + $0x1a]]
    %423 = vrot.lane.b32.xlu0 %v374, 126
    %v424 = vpop.permute.xlu0 %423
    %425 = vrot.lane.b32.xlu0 %v375, 126
    %v426 = vpop.permute.xlu0 %425
    %v427 = vstv %s422
    %v428 = vmul.f32 %v427, %v424
    %v429 = vmul.f32 %v427, %v426
    %v430 = vadd.f32 %v420, %v428
    %v431 = vadd.f32 %v421, %v429
    %s432 = sld [smem:[#allocation8 + $0x1b]]
    %433 = vrot.lane.b32.xlu0 %v374, 125
    %v434 = vpop.permute.xlu0 %433
    %435 = vrot.lane.b32.xlu0 %v375, 125
    %v436 = vpop.permute.xlu0 %435
    %v437 = vstv %s432
    %v438 = vmul.f32 %v437, %v434
    %v439 = vmul.f32 %v437, %v436
    %v440 = vadd.f32 %v430, %v438
    %v441 = vadd.f32 %v431, %v439
    %v442 = vld [vmem:[#allocation2 + $0x4] sm:$0xff]
    %v443 = vld [vmem:[#allocation2 + $0xc] sm:$0xff]
    %s444 = sld [smem:[#allocation8 + $0x1c]]
    %445 = vrot.lane.b32.xlu0 %v442, 3
    %v446 = vpop.permute.xlu0 %445
    %447 = vrot.lane.b32.xlu0 %v443, 3
    %v448 = vpop.permute.xlu0 %447
    %v449 = vstv %s444
    %v450 = vmul.f32 %v449, %v446
    %v451 = vmul.f32 %v449, %v448
    %v452 = vadd.f32 %v372, %v450
    %v453 = vadd.f32 %v373, %v451
    %s454 = sld [smem:[#allocation8 + $0x1d]]
    %455 = vrot.lane.b32.xlu0 %v442, 2
    %v456 = vpop.permute.xlu0 %455
    %457 = vrot.lane.b32.xlu0 %v443, 2
    %v458 = vpop.permute.xlu0 %457
    %v459 = vstv %s454
    %v460 = vmul.f32 %v459, %v456
    %v461 = vmul.f32 %v459, %v458
    %v462 = vadd.f32 %v452, %v460
    %v463 = vadd.f32 %v453, %v461
    %s464 = sld [smem:[#allocation8 + $0x1e]]
    %465 = vrot.lane.b32.xlu0 %v442, 1
    %v466 = vpop.permute.xlu0 %465
    %467 = vrot.lane.b32.xlu0 %v443, 1
    %v468 = vpop.permute.xlu0 %467
    %v469 = vstv %s464
    %v470 = vmul.f32 %v469, %v466
    %v471 = vmul.f32 %v469, %v468
    %v472 = vadd.f32 %v462, %v470
    %v473 = vadd.f32 %v463, %v471
    %s474 = sld [smem:[#allocation8 + $0x1f]]
    %v475 = vstv %s474
    %v476 = vmul.f32 %v475, %v442
    %v477 = vmul.f32 %v475, %v443
    %v478 = vadd.f32 %v472, %v476
    %v479 = vadd.f32 %v473, %v477
    %s480 = sld [smem:[#allocation8 + $0x20]]
    %481 = vrot.lane.b32.xlu0 %v442, 127
    %v482 = vpop.permute.xlu0 %481
    %483 = vrot.lane.b32.xlu0 %v443, 127
    %v484 = vpop.permute.xlu0 %483
    %v485 = vstv %s480
    %v486 = vmul.f32 %v485, %v482
    %v487 = vmul.f32 %v485, %v484
    %v488 = vadd.f32 %v478, %v486
    %v489 = vadd.f32 %v479, %v487
    %s490 = sld [smem:[#allocation8 + $0x21]]
    %491 = vrot.lane.b32.xlu0 %v442, 126
    %v492 = vpop.permute.xlu0 %491
    %493 = vrot.lane.b32.xlu0 %v443, 126
    %v494 = vpop.permute.xlu0 %493
    %v495 = vstv %s490
    %v496 = vmul.f32 %v495, %v492
    %v497 = vmul.f32 %v495, %v494
    %v498 = vadd.f32 %v488, %v496
    %v499 = vadd.f32 %v489, %v497
    %s500 = sld [smem:[#allocation8 + $0x22]]
    %501 = vrot.lane.b32.xlu0 %v442, 125
    %v502 = vpop.permute.xlu0 %501
    %503 = vrot.lane.b32.xlu0 %v443, 125
    %v504 = vpop.permute.xlu0 %503
    %v505 = vstv %s500
    %v506 = vmul.f32 %v505, %v502
    %v507 = vmul.f32 %v505, %v504
    %v508 = vadd.f32 %v498, %v506
    %v509 = vadd.f32 %v499, %v507
    %v510 = vld [vmem:[#allocation2 + $0x5] sm:$0xff]
    %v511 = vld [vmem:[#allocation2 + $0xd] sm:$0xff]
    %s512 = sld [smem:[#allocation8 + $0x23]]
    %513 = vrot.lane.b32.xlu0 %v510, 3
    %v514 = vpop.permute.xlu0 %513
    %515 = vrot.lane.b32.xlu0 %v511, 3
    %v516 = vpop.permute.xlu0 %515
    %v517 = vstv %s512
    %v518 = vmul.f32 %v517, %v514
    %v519 = vmul.f32 %v517, %v516
    %v520 = vadd.f32 %v440, %v518
    %v521 = vadd.f32 %v441, %v519
    %s522 = sld [smem:[#allocation8 + $0x24]]
    %523 = vrot.lane.b32.xlu0 %v510, 2
    %v524 = vpop.permute.xlu0 %523
    %525 = vrot.lane.b32.xlu0 %v511, 2
    %v526 = vpop.permute.xlu0 %525
    %v527 = vstv %s522
    %v528 = vmul.f32 %v527, %v524
    %v529 = vmul.f32 %v527, %v526
    %v530 = vadd.f32 %v520, %v528
    %v531 = vadd.f32 %v521, %v529
    %s532 = sld [smem:[#allocation8 + $0x25]]
    %533 = vrot.lane.b32.xlu0 %v510, 1
    %v534 = vpop.permute.xlu0 %533
    %535 = vrot.lane.b32.xlu0 %v511, 1
    %v536 = vpop.permute.xlu0 %535
    %v537 = vstv %s532
    %v538 = vmul.f32 %v537, %v534
    %v539 = vmul.f32 %v537, %v536
    %v540 = vadd.f32 %v530, %v538
    %v541 = vadd.f32 %v531, %v539
    %s542 = sld [smem:[#allocation8 + $0x26]]
    %v543 = vstv %s542
    %v544 = vmul.f32 %v543, %v510
    %v545 = vmul.f32 %v543, %v511
    %v546 = vadd.f32 %v540, %v544
    %v547 = vadd.f32 %v541, %v545
    %s548 = sld [smem:[#allocation8 + $0x27]]
    %549 = vrot.lane.b32.xlu0 %v510, 127
    %v550 = vpop.permute.xlu0 %549
    %551 = vrot.lane.b32.xlu0 %v511, 127
    %v552 = vpop.permute.xlu0 %551
    %v553 = vstv %s548
    %v554 = vmul.f32 %v553, %v550
    %v555 = vmul.f32 %v553, %v552
    %v556 = vadd.f32 %v546, %v554
    %v557 = vadd.f32 %v547, %v555
    %s558 = sld [smem:[#allocation8 + $0x28]]
    %559 = vrot.lane.b32.xlu0 %v510, 126
    %v560 = vpop.permute.xlu0 %559
    %561 = vrot.lane.b32.xlu0 %v511, 126
    %v562 = vpop.permute.xlu0 %561
    %v563 = vstv %s558
    %v564 = vmul.f32 %v563, %v560
    %v565 = vmul.f32 %v563, %v562
    %v566 = vadd.f32 %v556, %v564
    %v567 = vadd.f32 %v557, %v565
    %s568 = sld [smem:[#allocation8 + $0x29]]
    %569 = vrot.lane.b32.xlu0 %v510, 125
    %v570 = vpop.permute.xlu0 %569
    %571 = vrot.lane.b32.xlu0 %v511, 125
    %v572 = vpop.permute.xlu0 %571
    %v573 = vstv %s568
    %v574 = vmul.f32 %v573, %v570
    %v575 = vmul.f32 %v573, %v572
    %v576 = vadd.f32 %v566, %v574
    %v577 = vadd.f32 %v567, %v575
    %v578 = vld [vmem:[#allocation2 + $0x6] sm:$0xff]
    %v579 = vld [vmem:[#allocation2 + $0xe] sm:$0xff]
    %s580 = sld [smem:[#allocation8 + $0x2a]]
    %581 = vrot.lane.b32.xlu0 %v578, 3
    %v582 = vpop.permute.xlu0 %581
    %583 = vrot.lane.b32.xlu0 %v579, 3
    %v584 = vpop.permute.xlu0 %583
    %v585 = vstv %s580
    %v586 = vmul.f32 %v585, %v582
    %v587 = vmul.f32 %v585, %v584
    %v588 = vadd.f32 %v508, %v586
    %v589 = vadd.f32 %v509, %v587
    %s590 = sld [smem:[#allocation8 + $0x2b]]
    %591 = vrot.lane.b32.xlu0 %v578, 2
    %v592 = vpop.permute.xlu0 %591
    %593 = vrot.lane.b32.xlu0 %v579, 2
    %v594 = vpop.permute.xlu0 %593
    %v595 = vstv %s590
    %v596 = vmul.f32 %v595, %v592
    %v597 = vmul.f32 %v595, %v594
    %v598 = vadd.f32 %v588, %v596
    %v599 = vadd.f32 %v589, %v597
    %s600 = sld [smem:[#allocation8 + $0x2c]]
    %601 = vrot.lane.b32.xlu0 %v578, 1
    %v602 = vpop.permute.xlu0 %601
    %603 = vrot.lane.b32.xlu0 %v579, 1
    %v604 = vpop.permute.xlu0 %603
    %v605 = vstv %s600
    %v606 = vmul.f32 %v605, %v602
    %v607 = vmul.f32 %v605, %v604
    %v608 = vadd.f32 %v598, %v606
    %v609 = vadd.f32 %v599, %v607
    %s610 = sld [smem:[#allocation8 + $0x2d]]
    %v611 = vstv %s610
    %v612 = vmul.f32 %v611, %v578
    %v613 = vmul.f32 %v611, %v579
    %v614 = vadd.f32 %v608, %v612
    %v615 = vadd.f32 %v609, %v613
    %s616 = sld [smem:[#allocation8 + $0x2e]]
    %617 = vrot.lane.b32.xlu0 %v578, 127
    %v618 = vpop.permute.xlu0 %617
    %619 = vrot.lane.b32.xlu0 %v579, 127
    %v620 = vpop.permute.xlu0 %619
    %v621 = vstv %s616
    %v622 = vmul.f32 %v621, %v618
    %v623 = vmul.f32 %v621, %v620
    %v624 = vadd.f32 %v614, %v622
    %v625 = vadd.f32 %v615, %v623
    %s626 = sld [smem:[#allocation8 + $0x2f]]
    %627 = vrot.lane.b32.xlu0 %v578, 126
    %v628 = vpop.permute.xlu0 %627
    %629 = vrot.lane.b32.xlu0 %v579, 126
    %v630 = vpop.permute.xlu0 %629
    %v631 = vstv %s626
    %v632 = vmul.f32 %v631, %v628
    %v633 = vmul.f32 %v631, %v630
    %v634 = vadd.f32 %v624, %v632
    %v635 = vadd.f32 %v625, %v633
    %s636 = sld [smem:[#allocation8 + $0x30]]
    %637 = vrot.lane.b32.xlu0 %v578, 125
    %v638 = vpop.permute.xlu0 %637
    %639 = vrot.lane.b32.xlu0 %v579, 125
    %v640 = vpop.permute.xlu0 %639
    %v641 = vstv %s636
    %v642 = vmul.f32 %v641, %v638
    %v643 = vmul.f32 %v641, %v640
    %v644 = vadd.f32 %v634, %v642
    %v645 = vadd.f32 %v635, %v643
    %v646 = vld [vmem:[%s107] sm:$0xff]
    %v647 = vld [vmem:[%s107 + $0x8] sm:$0xff]
    %s648 = sld [smem:[#allocation8 + $0x31]]
    %649 = vrot.lane.b32.xlu0 %v646, 3
    %v650 = vpop.permute.xlu0 %649
    %651 = vrot.lane.b32.xlu0 %v647, 3
    %v652 = vpop.permute.xlu0 %651
    %v653 = vstv %s648
    %v654 = vmul.f32 %v653, %v650
    %v655 = vmul.f32 %v653, %v652
    %v656 = vadd.f32 %v654, 0.0
    %v657 = vadd.f32 %v655, 0.0
    %s658 = sld [smem:[#allocation8 + $0x32]]
    %659 = vrot.lane.b32.xlu0 %v646, 2
    %v660 = vpop.permute.xlu0 %659
    %661 = vrot.lane.b32.xlu0 %v647, 2
    %v662 = vpop.permute.xlu0 %661
    %v663 = vstv %s658
    %v664 = vmul.f32 %v663, %v660
    %v665 = vmul.f32 %v663, %v662
    %v666 = vadd.f32 %v656, %v664
    %v667 = vadd.f32 %v657, %v665
    %s668 = sld [smem:[#allocation8 + $0x33]]
    %669 = vrot.lane.b32.xlu0 %v646, 1
    %v670 = vpop.permute.xlu0 %669
    %671 = vrot.lane.b32.xlu0 %v647, 1
    %v672 = vpop.permute.xlu0 %671
    %v673 = vstv %s668
    %v674 = vmul.f32 %v673, %v670
    %v675 = vmul.f32 %v673, %v672
    %v676 = vadd.f32 %v666, %v674
    %v677 = vadd.f32 %v667, %v675
    %s678 = sld [smem:[#allocation8 + $0x34]]
    %v679 = vstv %s678
    %v680 = vmul.f32 %v679, %v646
    %v681 = vmul.f32 %v679, %v647
    %v682 = vadd.f32 %v676, %v680
    %v683 = vadd.f32 %v677, %v681
    %s684 = sld [smem:[#allocation8 + $0x35]]
    %685 = vrot.lane.b32.xlu0 %v646, 127
    %v686 = vpop.permute.xlu0 %685
    %687 = vrot.lane.b32.xlu0 %v647, 127
    %v688 = vpop.permute.xlu0 %687
    %v689 = vstv %s684
    %v690 = vmul.f32 %v689, %v686
    %v691 = vmul.f32 %v689, %v688
    %v692 = vadd.f32 %v682, %v690
    %v693 = vadd.f32 %v683, %v691
    %s694 = sld [smem:[#allocation8 + $0x36]]
    %695 = vrot.lane.b32.xlu0 %v646, 126
    %v696 = vpop.permute.xlu0 %695
    %697 = vrot.lane.b32.xlu0 %v647, 126
    %v698 = vpop.permute.xlu0 %697
    %v699 = vstv %s694
    %v700 = vmul.f32 %v699, %v696
    %v701 = vmul.f32 %v699, %v698
    %v702 = vadd.f32 %v692, %v700
    %v703 = vadd.f32 %v693, %v701
    %s704 = sld [smem:[#allocation8 + $0x37]]
    %705 = vrot.lane.b32.xlu0 %v646, 125
    %v706 = vpop.permute.xlu0 %705
    %707 = vrot.lane.b32.xlu0 %v647, 125
    %v708 = vpop.permute.xlu0 %707
    %v709 = vstv %s704
    %v710 = vmul.f32 %v709, %v706
    %v711 = vmul.f32 %v709, %v708
    %v712 = vadd.f32 %v702, %v710
    %v713 = vadd.f32 %v703, %v711
    %v714 = vld [vmem:[%s107 + $0x1] sm:$0xff]
    %v715 = vld [vmem:[%s107 + $0x9] sm:$0xff]
    %s716 = sld [smem:[#allocation8 + $0x38]]
    %717 = vrot.lane.b32.xlu0 %v714, 3
    %v718 = vpop.permute.xlu0 %717
    %719 = vrot.lane.b32.xlu0 %v715, 3
    %v720 = vpop.permute.xlu0 %719
    %v721 = vstv %s716
    %v722 = vmul.f32 %v721, %v718
    %v723 = vmul.f32 %v721, %v720
    %v724 = vadd.f32 %v722, 0.0
    %v725 = vadd.f32 %v723, 0.0
    %s726 = sld [smem:[#allocation8 + $0x39]]
    %727 = vrot.lane.b32.xlu0 %v714, 2
    %v728 = vpop.permute.xlu0 %727
    %729 = vrot.lane.b32.xlu0 %v715, 2
    %v730 = vpop.permute.xlu0 %729
    %v731 = vstv %s726
    %v732 = vmul.f32 %v731, %v728
    %v733 = vmul.f32 %v731, %v730
    %v734 = vadd.f32 %v724, %v732
    %v735 = vadd.f32 %v725, %v733
    %s736 = sld [smem:[#allocation8 + $0x3a]]
    %737 = vrot.lane.b32.xlu0 %v714, 1
    %v738 = vpop.permute.xlu0 %737
    %739 = vrot.lane.b32.xlu0 %v715, 1
    %v740 = vpop.permute.xlu0 %739
    %v741 = vstv %s736
    %v742 = vmul.f32 %v741, %v738
    %v743 = vmul.f32 %v741, %v740
    %v744 = vadd.f32 %v734, %v742
    %v745 = vadd.f32 %v735, %v743
    %s746 = sld [smem:[#allocation8 + $0x3b]]
    %v747 = vstv %s746
    %v748 = vmul.f32 %v747, %v714
    %v749 = vmul.f32 %v747, %v715
    %v750 = vadd.f32 %v744, %v748
    %v751 = vadd.f32 %v745, %v749
    %s752 = sld [smem:[#allocation8 + $0x3c]]
    %753 = vrot.lane.b32.xlu0 %v714, 127
    %v754 = vpop.permute.xlu0 %753
    %755 = vrot.lane.b32.xlu0 %v715, 127
    %v756 = vpop.permute.xlu0 %755
    %v757 = vstv %s752
    %v758 = vmul.f32 %v757, %v754
    %v759 = vmul.f32 %v757, %v756
    %v760 = vadd.f32 %v750, %v758
    %v761 = vadd.f32 %v751, %v759
    %s762 = sld [smem:[#allocation8 + $0x3d]]
    %763 = vrot.lane.b32.xlu0 %v714, 126
    %v764 = vpop.permute.xlu0 %763
    %765 = vrot.lane.b32.xlu0 %v715, 126
    %v766 = vpop.permute.xlu0 %765
    %v767 = vstv %s762
    %v768 = vmul.f32 %v767, %v764
    %v769 = vmul.f32 %v767, %v766
    %v770 = vadd.f32 %v760, %v768
    %v771 = vadd.f32 %v761, %v769
    %s772 = sld [smem:[#allocation8 + $0x3e]]
    %773 = vrot.lane.b32.xlu0 %v714, 125
    %v774 = vpop.permute.xlu0 %773
    %775 = vrot.lane.b32.xlu0 %v715, 125
    %v776 = vpop.permute.xlu0 %775
    %v777 = vstv %s772
    %v778 = vmul.f32 %v777, %v774
    %v779 = vmul.f32 %v777, %v776
    %v780 = vadd.f32 %v770, %v778
    %v781 = vadd.f32 %v771, %v779
    %v782 = vld [vmem:[%s107 + $0x2] sm:$0xff]
    %v783 = vld [vmem:[%s107 + $0xa] sm:$0xff]
    %s784 = sld [smem:[#allocation8 + $0x3f]]
    %785 = vrot.lane.b32.xlu0 %v782, 3
    %v786 = vpop.permute.xlu0 %785
    %787 = vrot.lane.b32.xlu0 %v783, 3
    %v788 = vpop.permute.xlu0 %787
    %v789 = vstv %s784
    %v790 = vmul.f32 %v789, %v786
    %v791 = vmul.f32 %v789, %v788
    %v792 = vadd.f32 %v712, %v790
    %v793 = vadd.f32 %v713, %v791
    %s794 = sld [smem:[#allocation8 + $0x40]]
    %795 = vrot.lane.b32.xlu0 %v782, 2
    %v796 = vpop.permute.xlu0 %795
    %797 = vrot.lane.b32.xlu0 %v783, 2
    %v798 = vpop.permute.xlu0 %797
    %v799 = vstv %s794
    %v800 = vmul.f32 %v799, %v796
    %v801 = vmul.f32 %v799, %v798
    %v802 = vadd.f32 %v792, %v800
    %v803 = vadd.f32 %v793, %v801
    %s804 = sld [smem:[#allocation8 + $0x41]]
    %805 = vrot.lane.b32.xlu0 %v782, 1
    %v806 = vpop.permute.xlu0 %805
    %807 = vrot.lane.b32.xlu0 %v783, 1
    %v808 = vpop.permute.xlu0 %807
    %v809 = vstv %s804
    %v810 = vmul.f32 %v809, %v806
    %v811 = vmul.f32 %v809, %v808
    %v812 = vadd.f32 %v802, %v810
    %v813 = vadd.f32 %v803, %v811
    %s814 = sld [smem:[#allocation8 + $0x42]]
    %v815 = vstv %s814
    %v816 = vmul.f32 %v815, %v782
    %v817 = vmul.f32 %v815, %v783
    %v818 = vadd.f32 %v812, %v816
    %v819 = vadd.f32 %v813, %v817
    %s820 = sld [smem:[#allocation8 + $0x43]]
    %821 = vrot.lane.b32.xlu0 %v782, 127
    %v822 = vpop.permute.xlu0 %821
    %823 = vrot.lane.b32.xlu0 %v783, 127
    %v824 = vpop.permute.xlu0 %823
    %v825 = vstv %s820
    %v826 = vmul.f32 %v825, %v822
    %v827 = vmul.f32 %v825, %v824
    %v828 = vadd.f32 %v818, %v826
    %v829 = vadd.f32 %v819, %v827
    %s830 = sld [smem:[#allocation8 + $0x44]]
    %831 = vrot.lane.b32.xlu0 %v782, 126
    %v832 = vpop.permute.xlu0 %831
    %833 = vrot.lane.b32.xlu0 %v783, 126
    %v834 = vpop.permute.xlu0 %833
    %v835 = vstv %s830
    %v836 = vmul.f32 %v835, %v832
    %v837 = vmul.f32 %v835, %v834
    %v838 = vadd.f32 %v828, %v836
    %v839 = vadd.f32 %v829, %v837
    %s840 = sld [smem:[#allocation8 + $0x45]]
    %841 = vrot.lane.b32.xlu0 %v782, 125
    %v842 = vpop.permute.xlu0 %841
    %843 = vrot.lane.b32.xlu0 %v783, 125
    %v844 = vpop.permute.xlu0 %843
    %v845 = vstv %s840
    %v846 = vmul.f32 %v845, %v842
    %v847 = vmul.f32 %v845, %v844
    %v848 = vadd.f32 %v838, %v846
    %v849 = vadd.f32 %v839, %v847
    %v850 = vld [vmem:[%s107 + $0x3] sm:$0xff]
    %v851 = vld [vmem:[%s107 + $0xb] sm:$0xff]
    %s852 = sld [smem:[#allocation8 + $0x46]]
    %853 = vrot.lane.b32.xlu0 %v850, 3
    %v854 = vpop.permute.xlu0 %853
    %855 = vrot.lane.b32.xlu0 %v851, 3
    %v856 = vpop.permute.xlu0 %855
    %v857 = vstv %s852
    %v858 = vmul.f32 %v857, %v854
    %v859 = vmul.f32 %v857, %v856
    %v860 = vadd.f32 %v780, %v858
    %v861 = vadd.f32 %v781, %v859
    %s862 = sld [smem:[#allocation8 + $0x47]]
    %863 = vrot.lane.b32.xlu0 %v850, 2
    %v864 = vpop.permute.xlu0 %863
    %865 = vrot.lane.b32.xlu0 %v851, 2
    %v866 = vpop.permute.xlu0 %865
    %v867 = vstv %s862
    %v868 = vmul.f32 %v867, %v864
    %v869 = vmul.f32 %v867, %v866
    %v870 = vadd.f32 %v860, %v868
    %v871 = vadd.f32 %v861, %v869
    %s872 = sld [smem:[#allocation8 + $0x48]]
    %873 = vrot.lane.b32.xlu0 %v850, 1
    %v874 = vpop.permute.xlu0 %873
    %875 = vrot.lane.b32.xlu0 %v851, 1
    %v876 = vpop.permute.xlu0 %875
    %v877 = vstv %s872
    %v878 = vmul.f32 %v877, %v874
    %v879 = vmul.f32 %v877, %v876
    %v880 = vadd.f32 %v870, %v878
    %v881 = vadd.f32 %v871, %v879
    %s882 = sld [smem:[#allocation8 + $0x49]]
    %v883 = vstv %s882
    %v884 = vmul.f32 %v883, %v850
    %v885 = vmul.f32 %v883, %v851
    %v886 = vadd.f32 %v880, %v884
    %v887 = vadd.f32 %v881, %v885
    %s888 = sld [smem:[#allocation8 + $0x4a]]
    %889 = vrot.lane.b32.xlu0 %v850, 127
    %v890 = vpop.permute.xlu0 %889
    %891 = vrot.lane.b32.xlu0 %v851, 127
    %v892 = vpop.permute.xlu0 %891
    %v893 = vstv %s888
    %v894 = vmul.f32 %v893, %v890
    %v895 = vmul.f32 %v893, %v892
    %v896 = vadd.f32 %v886, %v894
    %v897 = vadd.f32 %v887, %v895
    %s898 = sld [smem:[#allocation8 + $0x4b]]
    %899 = vrot.lane.b32.xlu0 %v850, 126
    %v900 = vpop.permute.xlu0 %899
    %901 = vrot.lane.b32.xlu0 %v851, 126
    %v902 = vpop.permute.xlu0 %901
    %v903 = vstv %s898
    %v904 = vmul.f32 %v903, %v900
    %v905 = vmul.f32 %v903, %v902
    %v906 = vadd.f32 %v896, %v904
    %v907 = vadd.f32 %v897, %v905
    %s908 = sld [smem:[#allocation8 + $0x4c]]
    %909 = vrot.lane.b32.xlu0 %v850, 125
    %v910 = vpop.permute.xlu0 %909
    %911 = vrot.lane.b32.xlu0 %v851, 125
    %v912 = vpop.permute.xlu0 %911
    %v913 = vstv %s908
    %v914 = vmul.f32 %v913, %v910
    %v915 = vmul.f32 %v913, %v912
    %v916 = vadd.f32 %v906, %v914
    %v917 = vadd.f32 %v907, %v915
    %v918 = vld [vmem:[%s107 + $0x4] sm:$0xff]
    %v919 = vld [vmem:[%s107 + $0xc] sm:$0xff]
    %s920 = sld [smem:[#allocation8 + $0x4d]]
    %921 = vrot.lane.b32.xlu0 %v918, 3
    %v922 = vpop.permute.xlu0 %921
    %923 = vrot.lane.b32.xlu0 %v919, 3
    %v924 = vpop.permute.xlu0 %923
    %v925 = vstv %s920
    %v926 = vmul.f32 %v925, %v922
    %v927 = vmul.f32 %v925, %v924
    %v928 = vadd.f32 %v848, %v926
    %v929 = vadd.f32 %v849, %v927
    %s930 = sld [smem:[#allocation8 + $0x4e]]
    %931 = vrot.lane.b32.xlu0 %v918, 2
    %v932 = vpop.permute.xlu0 %931
    %933 = vrot.lane.b32.xlu0 %v919, 2
    %v934 = vpop.permute.xlu0 %933
    %v935 = vstv %s930
    %v936 = vmul.f32 %v935, %v932
    %v937 = vmul.f32 %v935, %v934
    %v938 = vadd.f32 %v928, %v936
    %v939 = vadd.f32 %v929, %v937
    %s940 = sld [smem:[#allocation8 + $0x4f]]
    %941 = vrot.lane.b32.xlu0 %v918, 1
    %v942 = vpop.permute.xlu0 %941
    %943 = vrot.lane.b32.xlu0 %v919, 1
    %v944 = vpop.permute.xlu0 %943
    %v945 = vstv %s940
    %v946 = vmul.f32 %v945, %v942
    %v947 = vmul.f32 %v945, %v944
    %v948 = vadd.f32 %v938, %v946
    %v949 = vadd.f32 %v939, %v947
    %s950 = sld [smem:[#allocation8 + $0x50]]
    %v951 = vstv %s950
    %v952 = vmul.f32 %v951, %v918
    %v953 = vmul.f32 %v951, %v919
    %v954 = vadd.f32 %v948, %v952
    %v955 = vadd.f32 %v949, %v953
    %s956 = sld [smem:[#allocation8 + $0x51]]
    %957 = vrot.lane.b32.xlu0 %v918, 127
    %v958 = vpop.permute.xlu0 %957
    %959 = vrot.lane.b32.xlu0 %v919, 127
    %v960 = vpop.permute.xlu0 %959
    %v961 = vstv %s956
    %v962 = vmul.f32 %v961, %v958
    %v963 = vmul.f32 %v961, %v960
    %v964 = vadd.f32 %v954, %v962
    %v965 = vadd.f32 %v955, %v963
    %s966 = sld [smem:[#allocation8 + $0x52]]
    %967 = vrot.lane.b32.xlu0 %v918, 126
    %v968 = vpop.permute.xlu0 %967
    %969 = vrot.lane.b32.xlu0 %v919, 126
    %v970 = vpop.permute.xlu0 %969
    %v971 = vstv %s966
    %v972 = vmul.f32 %v971, %v968
    %v973 = vmul.f32 %v971, %v970
    %v974 = vadd.f32 %v964, %v972
    %v975 = vadd.f32 %v965, %v973
    %s976 = sld [smem:[#allocation8 + $0x53]]
    %977 = vrot.lane.b32.xlu0 %v918, 125
    %v978 = vpop.permute.xlu0 %977
    %979 = vrot.lane.b32.xlu0 %v919, 125
    %v980 = vpop.permute.xlu0 %979
    %v981 = vstv %s976
    %v982 = vmul.f32 %v981, %v978
    %v983 = vmul.f32 %v981, %v980
    %v984 = vadd.f32 %v974, %v982
    %v985 = vadd.f32 %v975, %v983
    %v986 = vld [vmem:[%s107 + $0x5] sm:$0xff]
    %v987 = vld [vmem:[%s107 + $0xd] sm:$0xff]
    %s988 = sld [smem:[#allocation8 + $0x54]]
    %989 = vrot.lane.b32.xlu0 %v986, 3
    %v990 = vpop.permute.xlu0 %989
    %991 = vrot.lane.b32.xlu0 %v987, 3
    %v992 = vpop.permute.xlu0 %991
    %v993 = vstv %s988
    %v994 = vmul.f32 %v993, %v990
    %v995 = vmul.f32 %v993, %v992
    %v996 = vadd.f32 %v916, %v994
    %v997 = vadd.f32 %v917, %v995
    %s998 = sld [smem:[#allocation8 + $0x55]]
    %999 = vrot.lane.b32.xlu0 %v986, 2
    %v1000 = vpop.permute.xlu0 %999
    %1001 = vrot.lane.b32.xlu0 %v987, 2
    %v1002 = vpop.permute.xlu0 %1001
    %v1003 = vstv %s998
    %v1004 = vmul.f32 %v1003, %v1000
    %v1005 = vmul.f32 %v1003, %v1002
    %v1006 = vadd.f32 %v996, %v1004
    %v1007 = vadd.f32 %v997, %v1005
    %s1008 = sld [smem:[#allocation8 + $0x56]]
    %1009 = vrot.lane.b32.xlu0 %v986, 1
    %v1010 = vpop.permute.xlu0 %1009
    %1011 = vrot.lane.b32.xlu0 %v987, 1
    %v1012 = vpop.permute.xlu0 %1011
    %v1013 = vstv %s1008
    %v1014 = vmul.f32 %v1013, %v1010
    %v1015 = vmul.f32 %v1013, %v1012
    %v1016 = vadd.f32 %v1006, %v1014
    %v1017 = vadd.f32 %v1007, %v1015
    %s1018 = sld [smem:[#allocation8 + $0x57]]
    %v1019 = vstv %s1018
    %v1020 = vmul.f32 %v1019, %v986
    %v1021 = vmul.f32 %v1019, %v987
    %v1022 = vadd.f32 %v1016, %v1020
    %v1023 = vadd.f32 %v1017, %v1021
    %s1024 = sld [smem:[#allocation8 + $0x58]]
    %1025 = vrot.lane.b32.xlu0 %v986, 127
    %v1026 = vpop.permute.xlu0 %1025
    %1027 = vrot.lane.b32.xlu0 %v987, 127
    %v1028 = vpop.permute.xlu0 %1027
    %v1029 = vstv %s1024
    %v1030 = vmul.f32 %v1029, %v1026
    %v1031 = vmul.f32 %v1029, %v1028
    %v1032 = vadd.f32 %v1022, %v1030
    %v1033 = vadd.f32 %v1023, %v1031
    %s1034 = sld [smem:[#allocation8 + $0x59]]
    %1035 = vrot.lane.b32.xlu0 %v986, 126
    %v1036 = vpop.permute.xlu0 %1035
    %1037 = vrot.lane.b32.xlu0 %v987, 126
    %v1038 = vpop.permute.xlu0 %1037
    %v1039 = vstv %s1034
    %v1040 = vmul.f32 %v1039, %v1036
    %v1041 = vmul.f32 %v1039, %v1038
    %v1042 = vadd.f32 %v1032, %v1040
    %v1043 = vadd.f32 %v1033, %v1041
    %s1044 = sld [smem:[#allocation8 + $0x5a]]
    %1045 = vrot.lane.b32.xlu0 %v986, 125
    %v1046 = vpop.permute.xlu0 %1045
    %1047 = vrot.lane.b32.xlu0 %v987, 125
    %v1048 = vpop.permute.xlu0 %1047
    %v1049 = vstv %s1044
    %v1050 = vmul.f32 %v1049, %v1046
    %v1051 = vmul.f32 %v1049, %v1048
    %v1052 = vadd.f32 %v1042, %v1050
    %v1053 = vadd.f32 %v1043, %v1051
    %v1054 = vld [vmem:[%s107 + $0x6] sm:$0xff]
    %v1055 = vld [vmem:[%s107 + $0xe] sm:$0xff]
    %s1056 = sld [smem:[#allocation8 + $0x5b]]
    %1057 = vrot.lane.b32.xlu0 %v1054, 3
    %v1058 = vpop.permute.xlu0 %1057
    %1059 = vrot.lane.b32.xlu0 %v1055, 3
    %v1060 = vpop.permute.xlu0 %1059
    %v1061 = vstv %s1056
    %v1062 = vmul.f32 %v1061, %v1058
    %v1063 = vmul.f32 %v1061, %v1060
    %v1064 = vadd.f32 %v984, %v1062
    %v1065 = vadd.f32 %v985, %v1063
    %s1066 = sld [smem:[#allocation8 + $0x5c]]
    %1067 = vrot.lane.b32.xlu0 %v1054, 2
    %v1068 = vpop.permute.xlu0 %1067
    %1069 = vrot.lane.b32.xlu0 %v1055, 2
    %v1070 = vpop.permute.xlu0 %1069
    %v1071 = vstv %s1066
    %v1072 = vmul.f32 %v1071, %v1068
    %v1073 = vmul.f32 %v1071, %v1070
    %v1074 = vadd.f32 %v1064, %v1072
    %v1075 = vadd.f32 %v1065, %v1073
    %s1076 = sld [smem:[#allocation8 + $0x5d]]
    %1077 = vrot.lane.b32.xlu0 %v1054, 1
    %v1078 = vpop.permute.xlu0 %1077
    %1079 = vrot.lane.b32.xlu0 %v1055, 1
    %v1080 = vpop.permute.xlu0 %1079
    %v1081 = vstv %s1076
    %v1082 = vmul.f32 %v1081, %v1078
    %v1083 = vmul.f32 %v1081, %v1080
    %v1084 = vadd.f32 %v1074, %v1082
    %v1085 = vadd.f32 %v1075, %v1083
    %s1086 = sld [smem:[#allocation8 + $0x5e]]
    %v1087 = vstv %s1086
    %v1088 = vmul.f32 %v1087, %v1054
    %v1089 = vmul.f32 %v1087, %v1055
    %v1090 = vadd.f32 %v1084, %v1088
    %v1091 = vadd.f32 %v1085, %v1089
    %s1092 = sld [smem:[#allocation8 + $0x5f]]
    %1093 = vrot.lane.b32.xlu0 %v1054, 127
    %v1094 = vpop.permute.xlu0 %1093
    %1095 = vrot.lane.b32.xlu0 %v1055, 127
    %v1096 = vpop.permute.xlu0 %1095
    %v1097 = vstv %s1092
    %v1098 = vmul.f32 %v1097, %v1094
    %v1099 = vmul.f32 %v1097, %v1096
    %v1100 = vadd.f32 %v1090, %v1098
    %v1101 = vadd.f32 %v1091, %v1099
    %s1102 = sld [smem:[#allocation8 + $0x60]]
    %1103 = vrot.lane.b32.xlu0 %v1054, 126
    %v1104 = vpop.permute.xlu0 %1103
    %1105 = vrot.lane.b32.xlu0 %v1055, 126
    %v1106 = vpop.permute.xlu0 %1105
    %v1107 = vstv %s1102
    %v1108 = vmul.f32 %v1107, %v1104
    %v1109 = vmul.f32 %v1107, %v1106
    %v1110 = vadd.f32 %v1100, %v1108
    %v1111 = vadd.f32 %v1101, %v1109
    %s1112 = sld [smem:[#allocation8 + $0x61]]
    %1113 = vrot.lane.b32.xlu0 %v1054, 125
    %v1114 = vpop.permute.xlu0 %1113
    %1115 = vrot.lane.b32.xlu0 %v1055, 125
    %v1116 = vpop.permute.xlu0 %1115
    %v1117 = vstv %s1112
    %v1118 = vmul.f32 %v1117, %v1114
    %v1119 = vmul.f32 %v1117, %v1116
    %v1120 = vadd.f32 %v1110, %v1118
    %v1121 = vadd.f32 %v1111, %v1119
    %v1122 = vadd.f32 %v644, %v576
    %v1123 = vadd.f32 %v645, %v577
    %v1124 = vadd.f32 %v1120, %v1052
    %v1125 = vadd.f32 %v1121, %v1053
    %v1126 = vadd.f32 %v1122, %v1124
    %v1127 = vadd.f32 %v1123, %v1125
    %s1128 = sld [smem:[#allocation3]]
    %v1129 = vstv %s1128
    %v1130 = vadd.f32 %v1126, %v1129
    %v1131 = vadd.f32 %v1127, %v1129
    %v1132 = vxor.u32 %v1130, 2147483648
    %v1133 = vxor.u32 %v1131, 2147483648
    %v1134 = vmul.f32 %v1132, 1.442695
    %v1135 = vpow.pop %v1134
    %v1136 = vmul.f32 %v1133, 1.442695
    %v1137 = vpow.pop %v1136
    %v1138 = vadd.f32 %v1135, 1.0
    %v1139 = vadd.f32 %v1137, 1.0
    %v1140 = vrcp.pop %v1138
    %v1141 = vmul.f32 1.0, %v1140
    %v1142 = vrcp.pop %v1139
    %v1143 = vmul.f32 1.0, %v1142
    %1144 = vst [vmem:[#allocation9] sm:$0xff] %v1141
    %1145 = vst [vmem:[#allocation9 + $0x8] sm:$0xff] %v1143
    // Predicated region
    $region22: #{tpu_custom_call.1} parent=1 // pred_check
      _
    $region23: #{tpu_custom_call.1} parent=1 // pred_check_branch
      %1147 = sbr.rel (0) target = $region25
    $region24: #{tpu_custom_call.1} parent=1 // pred_region
      %s1149 = ssub.s32 256, 256
      %1150 = vsyncadd [#allocation6], %s1149
      %s1151 = sshll.u32 [#allocation9], 4
      %s1152 = int_to_ptr.vmem [resolvable:$true] %s1151
      %1157 = dma.vmem_to_hbm [thread:$0]  %s1152, 256, %s3, [#allocation6], 128, 128, 8
    $region25: #{tpu_custom_call.1} parent=1 // pred_fallthru
      _
    // Predicated region
    $region26: #{tpu_custom_call.1} parent=1 // pred_check
      _
    $region27: #{tpu_custom_call.1} parent=1 // pred_check_branch
      %1159 = sbr.rel (0) target = $region29
    $region28: #{tpu_custom_call.1} parent=1 // pred_region
      %1160 = dma.done [#allocation6], 256
    $region29: #{tpu_custom_call.1} parent=1 // pred_fallthru
      _
    %1161 = vsyncpa [#allocation5], 1
    %1162 = vsyncpa [#allocation6], 1
    %1163 = vsyncpa [#allocation7], 1

</llo_original>
